<compile_context>
chip_gen: v6e
topology: v6e:2x2x1
jax: 0.10.0
libtpu: 0.0.40
codegen_flags: <defaults>
</compile_context>

<pallas_src>
import functools

import jax
import jax.numpy as jnp
from jax.experimental import pallas as pl
from jax.experimental.pallas import tpu as pltpu


def _causal_matching_kernel(
    img_ref, txt_ref,                       # VMEM (n_nodes, TB, H) compacted node-major features
    w1a_ref, w1b_ref, b1_ref,               # causal_strength_net L1 (W1 split: no src/dst lane concat)
    w2_ref, b2_ref, w3_ref, b3_ref,         # causal_strength_net L2 / L3
    wa1_ref, ba1_ref, wa2_ref, ba2_ref,     # path_aggregation
    out_ref,                                # VMEM (TB, 1) final matching score for this batch tile
    *, segments, uidx, n_paths, tb,
):
    n_edges = len(uidx[0])
    n_unique = sum(len(s) - 1 for s in segments)
    n_stack = sum(len(s) for s in segments)
    f32 = jnp.float32

    # ---- 1. Gather: ONE overlapping node stack per (modality, walk segment). ---
    # Node ids are static Python ints -> every feat_ref[node] is a static
    # leading-axis (TB, H) slice; TB is a sublane multiple so all concat pieces
    # and slice offsets below are whole sublane tiles (pure vreg placement).
    rows = []
    for feat_ref in (img_ref, txt_ref):
        for seg in segments:
            for node in seg:
                rows.append(feat_ref[node])                     # (TB, H)
    stack = jnp.concatenate(rows, axis=0)                       # (2 * n_stack * TB, H)

    # src/dst of every UNIQUE edge are overlapping slices of the same stack.
    src_parts, dst_parts = [], []
    for m in range(2):                                          # modality-major row order
        off = m * n_stack
        for seg in segments:
            L = len(seg)
            s0 = off * tb
            src_parts.append(stack[s0: s0 + (L - 1) * tb])
            dst_parts.append(stack[s0 + tb: s0 + L * tb])
            off += L
    src = jnp.concatenate(src_parts, axis=0)                    # (2 * U * TB, H)
    dst = jnp.concatenate(dst_parts, axis=0)                    # (2 * U * TB, H)

    # ---- 2. causal_strength_net on UNIQUE edges only (rows: modality, edge, b).
    # concat([src, dst], -1) @ W1 == src @ W1a + dst @ W1b  (W1 split in wrapper).
    h = (jnp.dot(src, w1a_ref[...], preferred_element_type=f32)
         + jnp.dot(dst, w1b_ref[...], preferred_element_type=f32)
         + b1_ref[...])
    h = jnp.maximum(h, 0.0)                                     # ReLU
    h = jnp.maximum(
        jnp.dot(h, w2_ref[...], preferred_element_type=f32) + b2_ref[...], 0.0)
    z = jnp.dot(h, w3_ref[...], preferred_element_type=f32)     # (2*U*TB, 1); b3/sigmoid deferred

    # ---- 3. Regroup logits to (2*P*TB, E); deferred bias + sigmoid (lane-dense).
    # Rows ordered (modality, path, batch); column e = strength of edge e of that
    # path.  uidx maps (path, edge) -> unique-edge row block (all static slices).
    blocks = []
    for m in range(2):
        for p in range(n_paths):
            cols = [z[(m * n_unique + uidx[p][e]) * tb:
                      (m * n_unique + uidx[p][e] + 1) * tb, :]
                    for e in range(n_edges)]
            blocks.append(jnp.concatenate(cols, axis=1))        # (TB, E)
    pf = jax.nn.sigmoid(jnp.concatenate(blocks, axis=0) + b3_ref[...])   # (2*P*TB, E)

    # ---- 4. path_aggregation, modality geometric mean, max over paths. --------
    h = jnp.maximum(
        jnp.dot(pf, wa1_ref[...], preferred_element_type=f32) + ba1_ref[...], 0.0)
    s = jax.nn.sigmoid(
        jnp.dot(h, wa2_ref[...], preferred_element_type=f32) + ba2_ref[...])     # (2*P*TB, 1)

    ptb = n_paths * tb
    geo = jnp.sqrt(s[:ptb, :] * s[ptb:, :])                     # (P*TB, 1): sqrt(img * txt)
    best = geo[:tb, :]
    for p in range(1, n_paths):                                 # torch.max over paths
        best = jnp.maximum(best, geo[p * tb:(p + 1) * tb, :])
    out_ref[...] = best.astype(out_ref.dtype)


def causal_matching_forward(img_features, text_features, paths, params):
    """Forward pass.  features: (B, N, H); paths: list of node-index lists."""
    B, N, H = img_features.shape
    P = len(paths)
    if P == 0:                                   # PyTorch: no paths -> zeros
        return jnp.zeros((B, 1), jnp.float32)
    paths = [tuple(int(n) for n in pth) for pth in paths]
    E = len(paths[0]) - 1
    assert all(len(pth) - 1 == E for pth in paths), "ragged paths unsupported"
    assert E == H, "see TODO(synk): path_aggregation needs edges-per-path == hidden_dim"

    (w1a, w1b, b1, w2, b2, w3, b3, wa1, ba1, wa2, ba2) = params
    weights = (w1a, w1b, b1, w2, b2, w3, b3, wa1, ba1, wa2, ba2)
    H2 = w2.shape[1]

    # ---- Static (trace-time) path structure: edge dedup + walk segments. ------
    unique_edges, seen = [], set()
    for pth in paths:
        for a, b in zip(pth[:-1], pth[1:]):
            if (a, b) not in seen:
                seen.add((a, b))
                unique_edges.append((a, b))
    segments = []                                 # greedy chain of unique edges into walks
    for a, b in unique_edges:
        if segments and segments[-1][-1] == a:
            segments[-1].append(b)
        else:
            segments.append([a, b])
    # Invariant (guards the modality/edge row-ordering correctness concern):
    # enumerating segment edges in order reproduces unique_edges exactly, so
    # unique edge u occupies row block u of the strength stack.
    assert [(s[i], s[i + 1]) for s in segments for i in range(len(s) - 1)] == unique_edges
    uidx = tuple(tuple(unique_edges.index((pth[e], pth[e + 1])) for e in range(E))
                 for pth in paths)
    U = len(unique_edges)

    # Only path-referenced nodes reach the kernel; remap to dense local ids.
    needed = sorted({n for pth in paths for n in pth})
    local = {n: i for i, n in enumerate(needed)}
    segments_local = tuple(tuple(local[n] for n in seg) for seg in segments)
    n_nodes = len(needed)

    # Batch tile: sublane-aligned; the grid over batch tiles is fully parallel.
    TB = 128 if B > 128 else -(-B // 8) * 8
    B_pad = -(-B // TB) * TB

    def compact(feat):
        feat = jnp.take(feat, jnp.asarray(needed, jnp.int32), axis=1)   # (B, n_nodes, H)
        feat = jnp.pad(feat, ((0, B_pad - B), (0, 0), (0, 0)))
        return jnp.transpose(feat, (1, 0, 2))                           # (n_nodes, B_pad, H)
    # TODO(synk): a PrefetchScalarGridSpec with a node-id-indexed BlockSpec would
    # avoid even this compaction copy (DMA path nodes straight from HBM).
    img_c = compact(img_features)
    txt_c = compact(text_features)

    kernel = functools.partial(_causal_matching_kernel,
                               segments=segments_local, uidx=uidx,
                               n_paths=P, tb=TB)

    feat_spec = pl.BlockSpec((n_nodes, TB, H), lambda i: (0, i, 0))
    w_specs = [pl.BlockSpec(w.shape, lambda i: (0, 0)) for w in weights]

    # Advisory cost hint (strength net on unique edges + aggregation + finals).
    R = 2 * U * B_pad
    flops = 2 * R * (2 * H * H + H * H2 + H2) + 2 * (2 * P * B_pad) * (E * H + H)
    transcendentals = 2 * P * B_pad * (E + 1) + P * B_pad
    bytes_accessed = int(sum(int(x.size) * x.dtype.itemsize
                             for x in (img_c, txt_c) + weights)) + B_pad * 4

    # VMEM budget derived from real block/weight sizes; capped well under v7x's
    # 64 MiB physical VMEM (do not reuse a 128 MiB-era limit).
    feat_block_bytes = 2 * n_nodes * TB * H * img_c.dtype.itemsize
    w_bytes = sum(int(x.size) * x.dtype.itemsize for x in weights)
    vmem_limit = int(min(48 << 20, max(16 << 20, 8 * (feat_block_bytes + w_bytes))))

    out = pl.pallas_call(
        kernel,
        out_shape=jax.ShapeDtypeStruct((B_pad, 1), jnp.float32),
        grid=(B_pad // TB,),
        in_specs=[feat_spec, feat_spec] + w_specs,
        out_specs=pl.BlockSpec((TB, 1), lambda i: (i, 0)),
        compiler_params=pltpu.CompilerParams(
            dimension_semantics=("parallel",),       # v7x: shard batch tiles over both TCs
            vmem_limit_bytes=vmem_limit),
        cost_estimate=pl.CostEstimate(flops=int(flops),
                                      transcendentals=int(transcendentals),
                                      bytes_accessed=bytes_accessed),
    )(img_c, txt_c, *weights)

    return out[:B]                                   # drop batch padding -> (B, 1)


def init_params(key, H):
    """Deterministic PyTorch-Linear-style init (uniform +-1/sqrt(fan_in))."""
    H2 = H // 2
    ks = jax.random.split(key, 5)

    def lin(k, fan_in, fan_out):
        kw, kb = jax.random.split(k)
        s = 1.0 / jnp.sqrt(fan_in)
        w = jax.random.uniform(kw, (fan_in, fan_out), jnp.float32, -s, s)
        b = jax.random.uniform(kb, (1, fan_out), jnp.float32, -s, s)
        return w, b

    w1, b1 = lin(ks[0], 2 * H, H)
    w2, b2 = lin(ks[1], H, H2)
    w3, b3 = lin(ks[2], H2, 1)
    wa1, ba1 = lin(ks[3], H, H)
    wa2, ba2 = lin(ks[4], H, 1)
    return (w1[:H], w1[H:], b1, w2, b2, w3, b3, wa1, ba1, wa2, ba2)


def ref_forward(img, txt, paths, params):
    """Pure-JAX reference mirroring the PyTorch forward."""
    (w1a, w1b, b1, w2, b2, w3, b3, wa1, ba1, wa2, ba2) = params

    def eval_path(feat, path):
        strengths = []
        for i in range(len(path) - 1):
            fs = feat[:, path[i]]
            fd = feat[:, path[i + 1]]
            h = jax.nn.relu(fs @ w1a + fd @ w1b + b1)
            h = jax.nn.relu(h @ w2 + b2)
            strengths.append(jax.nn.sigmoid(h @ w3 + b3))     # (B, 1)
        pf = jnp.concatenate(strengths, axis=-1)              # (B, E)
        h = jax.nn.relu(pf @ wa1 + ba1)
        return jax.nn.sigmoid(h @ wa2 + ba2)                  # (B, 1)

    ps = [jnp.sqrt(eval_path(img, pth) * eval_path(txt, pth)) for pth in paths]
    return jnp.max(jnp.stack(ps, axis=1), axis=1)             # (B, 1)


if __name__ == "__main__":
    key = jax.random.PRNGKey(0)
    B, N, H = 4, 10, 8
    k_img, k_txt, k_par = jax.random.split(key, 3)
    img = jax.random.normal(k_img, (B, N, H), jnp.float32)
    txt = jax.random.normal(k_txt, (B, N, H), jnp.float32)
    params = init_params(k_par, H)

    # Causal DAG over nodes 0..9 (source 0, target N-1=9); nx.all_simple_paths
    # would enumerate these 8-edge paths (host-side glue).  The path sets share
    # long prefixes, exercising the edge-dedup / walk-segment regrouping, and
    # img != txt per node so any modality mispairing would fail the ref check.
    cases = [
        [[0, 1, 2, 3, 4, 5, 6, 7, 9],
         [0, 1, 2, 3, 8, 5, 6, 7, 9]],
        [[0, 1, 2, 3, 4, 5, 6, 7, 9],
         [0, 1, 2, 3, 8, 5, 6, 7, 9],
         [0, 1, 2, 3, 4, 5, 6, 8, 9]],
    ]
    for paths in cases:
        out = jax.block_until_ready(causal_matching_forward(img, txt, paths, params))
        ref = ref_forward(img, txt, paths, params)
        assert out.shape == (B, 1)
        assert jnp.allclose(out, ref, atol=1e-5, rtol=1e-5), (out, ref)
    print("KERNEL_OK")
</pallas_src>

<mosaic_0001>
module attributes {stable_mosaic.version = 11 : i64} {
  func.func @_causal_matching_kernel(%arg0: i32, %arg1: memref<10x8x8xf32, #tpu.memory_space<vmem>>, %arg2: memref<10x8x8xf32, #tpu.memory_space<vmem>>, %arg3: memref<8x8xf32, #tpu.memory_space<vmem>>, %arg4: memref<8x8xf32, #tpu.memory_space<vmem>>, %arg5: memref<1x8xf32, #tpu.memory_space<vmem>>, %arg6: memref<8x4xf32, #tpu.memory_space<vmem>>, %arg7: memref<1x4xf32, #tpu.memory_space<vmem>>, %arg8: memref<4x1xf32, #tpu.memory_space<vmem>>, %arg9: memref<1x1xf32, #tpu.memory_space<vmem>>, %arg10: memref<8x8xf32, #tpu.memory_space<vmem>>, %arg11: memref<1x8xf32, #tpu.memory_space<vmem>>, %arg12: memref<8x1xf32, #tpu.memory_space<vmem>>, %arg13: memref<1x1xf32, #tpu.memory_space<vmem>>, %arg14: memref<8x1xf32, #tpu.memory_space<vmem>>) attributes {dimension_semantics = [#tpu.dimension_semantics<parallel>], iteration_bounds = array<i64: 1>, scalar_prefetch = 0 : i64, scratch_operands = 0 : i64, tpu.core_type = #tpu.core_type<tc>, window_params = [{transform_indices = @transform_0, window_bounds = array<i64: 10, 8, 8>}, {transform_indices = @transform_1, window_bounds = array<i64: 10, 8, 8>}, {pipeline_mode = #tpu.pipeline_mode<synchronous>, transform_indices = @transform_2, window_bounds = array<i64: 8, 8>}, {pipeline_mode = #tpu.pipeline_mode<synchronous>, transform_indices = @transform_3, window_bounds = array<i64: 8, 8>}, {pipeline_mode = #tpu.pipeline_mode<synchronous>, transform_indices = @transform_4, window_bounds = array<i64: 1, 8>}, {pipeline_mode = #tpu.pipeline_mode<synchronous>, transform_indices = @transform_5, window_bounds = array<i64: 8, 4>}, {pipeline_mode = #tpu.pipeline_mode<synchronous>, transform_indices = @transform_6, window_bounds = array<i64: 1, 4>}, {pipeline_mode = #tpu.pipeline_mode<synchronous>, transform_indices = @transform_7, window_bounds = array<i64: 4, 1>}, {pipeline_mode = #tpu.pipeline_mode<synchronous>, transform_indices = @transform_8, window_bounds = array<i64: 1, 1>}, {pipeline_mode = #tpu.pipeline_mode<synchronous>, transform_indices = @transform_9, window_bounds = array<i64: 8, 8>}, {pipeline_mode = #tpu.pipeline_mode<synchronous>, transform_indices = @transform_10, window_bounds = array<i64: 1, 8>}, {pipeline_mode = #tpu.pipeline_mode<synchronous>, transform_indices = @transform_11, window_bounds = array<i64: 8, 1>}, {pipeline_mode = #tpu.pipeline_mode<synchronous>, transform_indices = @transform_12, window_bounds = array<i64: 1, 1>}, {transform_indices = @transform_13, window_bounds = array<i64: 8, 1>}]} {
    %c0 = arith.constant 0 : index
    %c0_0 = arith.constant 0 : index
    %c0_1 = arith.constant 0 : index
    %0 = vector.load %arg1[%c0, %c0_0, %c0_1] : memref<10x8x8xf32, #tpu.memory_space<vmem>>, vector<1x8x8xf32>
    %1 = vector.shape_cast %0 : vector<1x8x8xf32> to vector<8x8xf32>
    %c1 = arith.constant 1 : index
    %c0_2 = arith.constant 0 : index
    %c0_3 = arith.constant 0 : index
    %2 = vector.load %arg1[%c1, %c0_2, %c0_3] : memref<10x8x8xf32, #tpu.memory_space<vmem>>, vector<1x8x8xf32>
    %3 = vector.shape_cast %2 : vector<1x8x8xf32> to vector<8x8xf32>
    %c2 = arith.constant 2 : index
    %c0_4 = arith.constant 0 : index
    %c0_5 = arith.constant 0 : index
    %4 = vector.load %arg1[%c2, %c0_4, %c0_5] : memref<10x8x8xf32, #tpu.memory_space<vmem>>, vector<1x8x8xf32>
    %5 = vector.shape_cast %4 : vector<1x8x8xf32> to vector<8x8xf32>
    %c3 = arith.constant 3 : index
    %c0_6 = arith.constant 0 : index
    %c0_7 = arith.constant 0 : index
    %6 = vector.load %arg1[%c3, %c0_6, %c0_7] : memref<10x8x8xf32, #tpu.memory_space<vmem>>, vector<1x8x8xf32>
    %7 = vector.shape_cast %6 : vector<1x8x8xf32> to vector<8x8xf32>
    %c4 = arith.constant 4 : index
    %c0_8 = arith.constant 0 : index
    %c0_9 = arith.constant 0 : index
    %8 = vector.load %arg1[%c4, %c0_8, %c0_9] : memref<10x8x8xf32, #tpu.memory_space<vmem>>, vector<1x8x8xf32>
    %9 = vector.shape_cast %8 : vector<1x8x8xf32> to vector<8x8xf32>
    %c5 = arith.constant 5 : index
    %c0_10 = arith.constant 0 : index
    %c0_11 = arith.constant 0 : index
    %10 = vector.load %arg1[%c5, %c0_10, %c0_11] : memref<10x8x8xf32, #tpu.memory_space<vmem>>, vector<1x8x8xf32>
    %11 = vector.shape_cast %10 : vector<1x8x8xf32> to vector<8x8xf32>
    %c6 = arith.constant 6 : index
    %c0_12 = arith.constant 0 : index
    %c0_13 = arith.constant 0 : index
    %12 = vector.load %arg1[%c6, %c0_12, %c0_13] : memref<10x8x8xf32, #tpu.memory_space<vmem>>, vector<1x8x8xf32>
    %13 = vector.shape_cast %12 : vector<1x8x8xf32> to vector<8x8xf32>
    %c7 = arith.constant 7 : index
    %c0_14 = arith.constant 0 : index
    %c0_15 = arith.constant 0 : index
    %14 = vector.load %arg1[%c7, %c0_14, %c0_15] : memref<10x8x8xf32, #tpu.memory_space<vmem>>, vector<1x8x8xf32>
    %15 = vector.shape_cast %14 : vector<1x8x8xf32> to vector<8x8xf32>
    %c9 = arith.constant 9 : index
    %c0_16 = arith.constant 0 : index
    %c0_17 = arith.constant 0 : index
    %16 = vector.load %arg1[%c9, %c0_16, %c0_17] : memref<10x8x8xf32, #tpu.memory_space<vmem>>, vector<1x8x8xf32>
    %17 = vector.shape_cast %16 : vector<1x8x8xf32> to vector<8x8xf32>
    %c3_18 = arith.constant 3 : index
    %c0_19 = arith.constant 0 : index
    %c0_20 = arith.constant 0 : index
    %18 = vector.load %arg1[%c3_18, %c0_19, %c0_20] : memref<10x8x8xf32, #tpu.memory_space<vmem>>, vector<1x8x8xf32>
    %19 = vector.shape_cast %18 : vector<1x8x8xf32> to vector<8x8xf32>
    %c8 = arith.constant 8 : index
    %c0_21 = arith.constant 0 : index
    %c0_22 = arith.constant 0 : index
    %20 = vector.load %arg1[%c8, %c0_21, %c0_22] : memref<10x8x8xf32, #tpu.memory_space<vmem>>, vector<1x8x8xf32>
    %21 = vector.shape_cast %20 : vector<1x8x8xf32> to vector<8x8xf32>
    %c5_23 = arith.constant 5 : index
    %c0_24 = arith.constant 0 : index
    %c0_25 = arith.constant 0 : index
    %22 = vector.load %arg1[%c5_23, %c0_24, %c0_25] : memref<10x8x8xf32, #tpu.memory_space<vmem>>, vector<1x8x8xf32>
    %23 = vector.shape_cast %22 : vector<1x8x8xf32> to vector<8x8xf32>
    %c0_26 = arith.constant 0 : index
    %c0_27 = arith.constant 0 : index
    %c0_28 = arith.constant 0 : index
    %24 = vector.load %arg2[%c0_26, %c0_27, %c0_28] : memref<10x8x8xf32, #tpu.memory_space<vmem>>, vector<1x8x8xf32>
    %25 = vector.shape_cast %24 : vector<1x8x8xf32> to vector<8x8xf32>
    %c1_29 = arith.constant 1 : index
    %c0_30 = arith.constant 0 : index
    %c0_31 = arith.constant 0 : index
    %26 = vector.load %arg2[%c1_29, %c0_30, %c0_31] : memref<10x8x8xf32, #tpu.memory_space<vmem>>, vector<1x8x8xf32>
    %27 = vector.shape_cast %26 : vector<1x8x8xf32> to vector<8x8xf32>
    %c2_32 = arith.constant 2 : index
    %c0_33 = arith.constant 0 : index
    %c0_34 = arith.constant 0 : index
    %28 = vector.load %arg2[%c2_32, %c0_33, %c0_34] : memref<10x8x8xf32, #tpu.memory_space<vmem>>, vector<1x8x8xf32>
    %29 = vector.shape_cast %28 : vector<1x8x8xf32> to vector<8x8xf32>
    %c3_35 = arith.constant 3 : index
    %c0_36 = arith.constant 0 : index
    %c0_37 = arith.constant 0 : index
    %30 = vector.load %arg2[%c3_35, %c0_36, %c0_37] : memref<10x8x8xf32, #tpu.memory_space<vmem>>, vector<1x8x8xf32>
    %31 = vector.shape_cast %30 : vector<1x8x8xf32> to vector<8x8xf32>
    %c4_38 = arith.constant 4 : index
    %c0_39 = arith.constant 0 : index
    %c0_40 = arith.constant 0 : index
    %32 = vector.load %arg2[%c4_38, %c0_39, %c0_40] : memref<10x8x8xf32, #tpu.memory_space<vmem>>, vector<1x8x8xf32>
    %33 = vector.shape_cast %32 : vector<1x8x8xf32> to vector<8x8xf32>
    %c5_41 = arith.constant 5 : index
    %c0_42 = arith.constant 0 : index
    %c0_43 = arith.constant 0 : index
    %34 = vector.load %arg2[%c5_41, %c0_42, %c0_43] : memref<10x8x8xf32, #tpu.memory_space<vmem>>, vector<1x8x8xf32>
    %35 = vector.shape_cast %34 : vector<1x8x8xf32> to vector<8x8xf32>
    %c6_44 = arith.constant 6 : index
    %c0_45 = arith.constant 0 : index
    %c0_46 = arith.constant 0 : index
    %36 = vector.load %arg2[%c6_44, %c0_45, %c0_46] : memref<10x8x8xf32, #tpu.memory_space<vmem>>, vector<1x8x8xf32>
    %37 = vector.shape_cast %36 : vector<1x8x8xf32> to vector<8x8xf32>
    %c7_47 = arith.constant 7 : index
    %c0_48 = arith.constant 0 : index
    %c0_49 = arith.constant 0 : index
    %38 = vector.load %arg2[%c7_47, %c0_48, %c0_49] : memref<10x8x8xf32, #tpu.memory_space<vmem>>, vector<1x8x8xf32>
    %39 = vector.shape_cast %38 : vector<1x8x8xf32> to vector<8x8xf32>
    %c9_50 = arith.constant 9 : index
    %c0_51 = arith.constant 0 : index
    %c0_52 = arith.constant 0 : index
    %40 = vector.load %arg2[%c9_50, %c0_51, %c0_52] : memref<10x8x8xf32, #tpu.memory_space<vmem>>, vector<1x8x8xf32>
    %41 = vector.shape_cast %40 : vector<1x8x8xf32> to vector<8x8xf32>
    %c3_53 = arith.constant 3 : index
    %c0_54 = arith.constant 0 : index
    %c0_55 = arith.constant 0 : index
    %42 = vector.load %arg2[%c3_53, %c0_54, %c0_55] : memref<10x8x8xf32, #tpu.memory_space<vmem>>, vector<1x8x8xf32>
    %43 = vector.shape_cast %42 : vector<1x8x8xf32> to vector<8x8xf32>
    %c8_56 = arith.constant 8 : index
    %c0_57 = arith.constant 0 : index
    %c0_58 = arith.constant 0 : index
    %44 = vector.load %arg2[%c8_56, %c0_57, %c0_58] : memref<10x8x8xf32, #tpu.memory_space<vmem>>, vector<1x8x8xf32>
    %45 = vector.shape_cast %44 : vector<1x8x8xf32> to vector<8x8xf32>
    %c5_59 = arith.constant 5 : index
    %c0_60 = arith.constant 0 : index
    %c0_61 = arith.constant 0 : index
    %46 = vector.load %arg2[%c5_59, %c0_60, %c0_61] : memref<10x8x8xf32, #tpu.memory_space<vmem>>, vector<1x8x8xf32>
    %47 = vector.shape_cast %46 : vector<1x8x8xf32> to vector<8x8xf32>
    %48 = tpu.concatenate %1, %3, %5, %7, %9, %11, %13, %15, %17, %19, %21, %23, %25, %27, %29, %31 in 0 : vector<8x8xf32>, vector<8x8xf32>, vector<8x8xf32>, vector<8x8xf32>, vector<8x8xf32>, vector<8x8xf32>, vector<8x8xf32>, vector<8x8xf32>, vector<8x8xf32>, vector<8x8xf32>, vector<8x8xf32>, vector<8x8xf32>, vector<8x8xf32>, vector<8x8xf32>, vector<8x8xf32>, vector<8x8xf32> -> vector<128x8xf32>
    %49 = tpu.concatenate %33, %35, %37, %39, %41, %43, %45, %47 in 0 : vector<8x8xf32>, vector<8x8xf32>, vector<8x8xf32>, vector<8x8xf32>, vector<8x8xf32>, vector<8x8xf32>, vector<8x8xf32>, vector<8x8xf32> -> vector<64x8xf32>
    %50 = tpu.concatenate %48, %49 in 0 : vector<128x8xf32>, vector<64x8xf32> -> vector<192x8xf32>
    %51 = vector.extract_strided_slice %50 {offsets = [0, 0], sizes = [64, 8], strides = [1, 1]} : vector<192x8xf32> to vector<64x8xf32>
    %52 = vector.extract_strided_slice %50 {offsets = [8, 0], sizes = [64, 8], strides = [1, 1]} : vector<192x8xf32> to vector<64x8xf32>
    %53 = vector.extract_strided_slice %50 {offsets = [72, 0], sizes = [16, 8], strides = [1, 1]} : vector<192x8xf32> to vector<16x8xf32>
    %54 = vector.extract_strided_slice %50 {offsets = [80, 0], sizes = [16, 8], strides = [1, 1]} : vector<192x8xf32> to vector<16x8xf32>
    %55 = vector.extract_strided_slice %50 {offsets = [96, 0], sizes = [64, 8], strides = [1, 1]} : vector<192x8xf32> to vector<64x8xf32>
    %56 = vector.extract_strided_slice %50 {offsets = [104, 0], sizes = [64, 8], strides = [1, 1]} : vector<192x8xf32> to vector<64x8xf32>
    %57 = vector.extract_strided_slice %50 {offsets = [168, 0], sizes = [16, 8], strides = [1, 1]} : vector<192x8xf32> to vector<16x8xf32>
    %58 = vector.extract_strided_slice %50 {offsets = [176, 0], sizes = [16, 8], strides = [1, 1]} : vector<192x8xf32> to vector<16x8xf32>
    %59 = tpu.concatenate %51, %53, %55, %57 in 0 : vector<64x8xf32>, vector<16x8xf32>, vector<64x8xf32>, vector<16x8xf32> -> vector<160x8xf32>
    %60 = tpu.concatenate %52, %54, %56, %58 in 0 : vector<64x8xf32>, vector<16x8xf32>, vector<64x8xf32>, vector<16x8xf32> -> vector<160x8xf32>
    %c0_62 = arith.constant 0 : index
    %c0_63 = arith.constant 0 : index
    %61 = vector.load %arg3[%c0_62, %c0_63] : memref<8x8xf32, #tpu.memory_space<vmem>>, vector<8x8xf32>
    %cst = arith.constant dense<0.000000e+00> : vector<160x8xf32>
    %62 = tpu.matmul %59, %61, %cst {dimension_numbers = #tpu.dot_dimension_numbers<[1], [0], [0], [1], [0, 0, 1, 1], [], []>} : vector<160x8xf32>, vector<8x8xf32>, vector<160x8xf32> -> vector<160x8xf32>
    %c0_64 = arith.constant 0 : index
    %c0_65 = arith.constant 0 : index
    %63 = vector.load %arg4[%c0_64, %c0_65] : memref<8x8xf32, #tpu.memory_space<vmem>>, vector<8x8xf32>
    %cst_66 = arith.constant dense<0.000000e+00> : vector<160x8xf32>
    %64 = tpu.matmul %60, %63, %cst_66 {dimension_numbers = #tpu.dot_dimension_numbers<[1], [0], [0], [1], [0, 0, 1, 1], [], []>} : vector<160x8xf32>, vector<8x8xf32>, vector<160x8xf32> -> vector<160x8xf32>
    %65 = arith.addf %62, %64 : vector<160x8xf32>
    %c0_67 = arith.constant 0 : index
    %c0_68 = arith.constant 0 : index
    %66 = vector.load %arg5[%c0_67, %c0_68] : memref<1x8xf32, #tpu.memory_space<vmem>>, vector<1x8xf32>
    %67 = vector.broadcast %66 : vector<1x8xf32> to vector<160x8xf32>
    %68 = arith.addf %65, %67 : vector<160x8xf32>
    %cst_69 = arith.constant 0.000000e+00 : f32
    %69 = vector.broadcast %cst_69 : f32 to vector<160x8xf32>
    %70 = arith.maximumf %68, %69 : vector<160x8xf32>
    %c0_70 = arith.constant 0 : index
    %c0_71 = arith.constant 0 : index
    %71 = vector.load %arg6[%c0_70, %c0_71] : memref<8x4xf32, #tpu.memory_space<vmem>>, vector<8x4xf32>
    %cst_72 = arith.constant dense<0.000000e+00> : vector<160x4xf32>
    %72 = tpu.matmul %70, %71, %cst_72 {dimension_numbers = #tpu.dot_dimension_numbers<[1], [0], [0], [1], [0, 0, 1, 1], [], []>} : vector<160x8xf32>, vector<8x4xf32>, vector<160x4xf32> -> vector<160x4xf32>
    %c0_73 = arith.constant 0 : index
    %c0_74 = arith.constant 0 : index
    %73 = vector.load %arg7[%c0_73, %c0_74] : memref<1x4xf32, #tpu.memory_space<vmem>>, vector<1x4xf32>
    %74 = vector.broadcast %73 : vector<1x4xf32> to vector<160x4xf32>
    %75 = arith.addf %72, %74 : vector<160x4xf32>
    %cst_75 = arith.constant 0.000000e+00 : f32
    %76 = vector.broadcast %cst_75 : f32 to vector<160x4xf32>
    %77 = arith.maximumf %75, %76 : vector<160x4xf32>
    %c0_76 = arith.constant 0 : index
    %c0_77 = arith.constant 0 : index
    %78 = vector.load %arg8[%c0_76, %c0_77] : memref<4x1xf32, #tpu.memory_space<vmem>>, vector<4x1xf32>
    %cst_78 = arith.constant dense<0.000000e+00> : vector<160x1xf32>
    %79 = tpu.matmul %77, %78, %cst_78 {dimension_numbers = #tpu.dot_dimension_numbers<[1], [0], [0], [1], [0, 0, 1, 1], [], []>} : vector<160x4xf32>, vector<4x1xf32>, vector<160x1xf32> -> vector<160x1xf32>
    %80 = vector.extract_strided_slice %79 {offsets = [0, 0], sizes = [8, 1], strides = [1, 1]} : vector<160x1xf32> to vector<8x1xf32>
    %81 = vector.extract_strided_slice %79 {offsets = [8, 0], sizes = [8, 1], strides = [1, 1]} : vector<160x1xf32> to vector<8x1xf32>
    %82 = vector.extract_strided_slice %79 {offsets = [16, 0], sizes = [8, 1], strides = [1, 1]} : vector<160x1xf32> to vector<8x1xf32>
    %83 = vector.extract_strided_slice %79 {offsets = [24, 0], sizes = [8, 1], strides = [1, 1]} : vector<160x1xf32> to vector<8x1xf32>
    %84 = vector.extract_strided_slice %79 {offsets = [32, 0], sizes = [8, 1], strides = [1, 1]} : vector<160x1xf32> to vector<8x1xf32>
    %85 = vector.extract_strided_slice %79 {offsets = [40, 0], sizes = [8, 1], strides = [1, 1]} : vector<160x1xf32> to vector<8x1xf32>
    %86 = vector.extract_strided_slice %79 {offsets = [48, 0], sizes = [8, 1], strides = [1, 1]} : vector<160x1xf32> to vector<8x1xf32>
    %87 = vector.extract_strided_slice %79 {offsets = [56, 0], sizes = [8, 1], strides = [1, 1]} : vector<160x1xf32> to vector<8x1xf32>
    %88 = tpu.concatenate %80, %81, %82, %83, %84, %85, %86, %87 in 1 : vector<8x1xf32>, vector<8x1xf32>, vector<8x1xf32>, vector<8x1xf32>, vector<8x1xf32>, vector<8x1xf32>, vector<8x1xf32>, vector<8x1xf32> -> vector<8x8xf32>
    %89 = vector.extract_strided_slice %79 {offsets = [0, 0], sizes = [8, 1], strides = [1, 1]} : vector<160x1xf32> to vector<8x1xf32>
    %90 = vector.extract_strided_slice %79 {offsets = [8, 0], sizes = [8, 1], strides = [1, 1]} : vector<160x1xf32> to vector<8x1xf32>
    %91 = vector.extract_strided_slice %79 {offsets = [16, 0], sizes = [8, 1], strides = [1, 1]} : vector<160x1xf32> to vector<8x1xf32>
    %92 = vector.extract_strided_slice %79 {offsets = [64, 0], sizes = [8, 1], strides = [1, 1]} : vector<160x1xf32> to vector<8x1xf32>
    %93 = vector.extract_strided_slice %79 {offsets = [72, 0], sizes = [8, 1], strides = [1, 1]} : vector<160x1xf32> to vector<8x1xf32>
    %94 = vector.extract_strided_slice %79 {offsets = [40, 0], sizes = [8, 1], strides = [1, 1]} : vector<160x1xf32> to vector<8x1xf32>
    %95 = vector.extract_strided_slice %79 {offsets = [48, 0], sizes = [8, 1], strides = [1, 1]} : vector<160x1xf32> to vector<8x1xf32>
    %96 = vector.extract_strided_slice %79 {offsets = [56, 0], sizes = [8, 1], strides = [1, 1]} : vector<160x1xf32> to vector<8x1xf32>
    %97 = tpu.concatenate %89, %90, %91, %92, %93, %94, %95, %96 in 1 : vector<8x1xf32>, vector<8x1xf32>, vector<8x1xf32>, vector<8x1xf32>, vector<8x1xf32>, vector<8x1xf32>, vector<8x1xf32>, vector<8x1xf32> -> vector<8x8xf32>
    %98 = vector.extract_strided_slice %79 {offsets = [80, 0], sizes = [8, 1], strides = [1, 1]} : vector<160x1xf32> to vector<8x1xf32>
    %99 = vector.extract_strided_slice %79 {offsets = [88, 0], sizes = [8, 1], strides = [1, 1]} : vector<160x1xf32> to vector<8x1xf32>
    %100 = vector.extract_strided_slice %79 {offsets = [96, 0], sizes = [8, 1], strides = [1, 1]} : vector<160x1xf32> to vector<8x1xf32>
    %101 = vector.extract_strided_slice %79 {offsets = [104, 0], sizes = [8, 1], strides = [1, 1]} : vector<160x1xf32> to vector<8x1xf32>
    %102 = vector.extract_strided_slice %79 {offsets = [112, 0], sizes = [8, 1], strides = [1, 1]} : vector<160x1xf32> to vector<8x1xf32>
    %103 = vector.extract_strided_slice %79 {offsets = [120, 0], sizes = [8, 1], strides = [1, 1]} : vector<160x1xf32> to vector<8x1xf32>
    %104 = vector.extract_strided_slice %79 {offsets = [128, 0], sizes = [8, 1], strides = [1, 1]} : vector<160x1xf32> to vector<8x1xf32>
    %105 = vector.extract_strided_slice %79 {offsets = [136, 0], sizes = [8, 1], strides = [1, 1]} : vector<160x1xf32> to vector<8x1xf32>
    %106 = tpu.concatenate %98, %99, %100, %101, %102, %103, %104, %105 in 1 : vector<8x1xf32>, vector<8x1xf32>, vector<8x1xf32>, vector<8x1xf32>, vector<8x1xf32>, vector<8x1xf32>, vector<8x1xf32>, vector<8x1xf32> -> vector<8x8xf32>
    %107 = vector.extract_strided_slice %79 {offsets = [80, 0], sizes = [8, 1], strides = [1, 1]} : vector<160x1xf32> to vector<8x1xf32>
    %108 = vector.extract_strided_slice %79 {offsets = [88, 0], sizes = [8, 1], strides = [1, 1]} : vector<160x1xf32> to vector<8x1xf32>
    %109 = vector.extract_strided_slice %79 {offsets = [96, 0], sizes = [8, 1], strides = [1, 1]} : vector<160x1xf32> to vector<8x1xf32>
    %110 = vector.extract_strided_slice %79 {offsets = [144, 0], sizes = [8, 1], strides = [1, 1]} : vector<160x1xf32> to vector<8x1xf32>
    %111 = vector.extract_strided_slice %79 {offsets = [152, 0], sizes = [8, 1], strides = [1, 1]} : vector<160x1xf32> to vector<8x1xf32>
    %112 = vector.extract_strided_slice %79 {offsets = [120, 0], sizes = [8, 1], strides = [1, 1]} : vector<160x1xf32> to vector<8x1xf32>
    %113 = vector.extract_strided_slice %79 {offsets = [128, 0], sizes = [8, 1], strides = [1, 1]} : vector<160x1xf32> to vector<8x1xf32>
    %114 = vector.extract_strided_slice %79 {offsets = [136, 0], sizes = [8, 1], strides = [1, 1]} : vector<160x1xf32> to vector<8x1xf32>
    %115 = tpu.concatenate %107, %108, %109, %110, %111, %112, %113, %114 in 1 : vector<8x1xf32>, vector<8x1xf32>, vector<8x1xf32>, vector<8x1xf32>, vector<8x1xf32>, vector<8x1xf32>, vector<8x1xf32>, vector<8x1xf32> -> vector<8x8xf32>
    %116 = tpu.concatenate %88, %97, %106, %115 in 0 : vector<8x8xf32>, vector<8x8xf32>, vector<8x8xf32>, vector<8x8xf32> -> vector<32x8xf32>
    %c0_79 = arith.constant 0 : index
    %c0_80 = arith.constant 0 : index
    %117 = vector.load %arg9[%c0_79, %c0_80] : memref<1x1xf32, #tpu.memory_space<vmem>>, vector<1x1xf32>
    %118 = vector.broadcast %117 : vector<1x1xf32> to vector<32x8xf32>
    %119 = arith.addf %116, %118 : vector<32x8xf32>
    %120 = arith.negf %119 : vector<32x8xf32>
    %121 = math.exp %120 : vector<32x8xf32>
    %cst_81 = arith.constant 1.000000e+00 : f32
    %122 = vector.broadcast %cst_81 : f32 to vector<32x8xf32>
    %123 = arith.addf %122, %121 : vector<32x8xf32>
    %124 = arith.divf %122, %123 : vector<32x8xf32>
    %c0_82 = arith.constant 0 : index
    %c0_83 = arith.constant 0 : index
    %125 = vector.load %arg10[%c0_82, %c0_83] : memref<8x8xf32, #tpu.memory_space<vmem>>, vector<8x8xf32>
    %cst_84 = arith.constant dense<0.000000e+00> : vector<32x8xf32>
    %126 = tpu.matmul %124, %125, %cst_84 {dimension_numbers = #tpu.dot_dimension_numbers<[1], [0], [0], [1], [0, 0, 1, 1], [], []>} : vector<32x8xf32>, vector<8x8xf32>, vector<32x8xf32> -> vector<32x8xf32>
    %c0_85 = arith.constant 0 : index
    %c0_86 = arith.constant 0 : index
    %127 = vector.load %arg11[%c0_85, %c0_86] : memref<1x8xf32, #tpu.memory_space<vmem>>, vector<1x8xf32>
    %128 = vector.broadcast %127 : vector<1x8xf32> to vector<32x8xf32>
    %129 = arith.addf %126, %128 : vector<32x8xf32>
    %cst_87 = arith.constant 0.000000e+00 : f32
    %130 = vector.broadcast %cst_87 : f32 to vector<32x8xf32>
    %131 = arith.maximumf %129, %130 : vector<32x8xf32>
    %c0_88 = arith.constant 0 : index
    %c0_89 = arith.constant 0 : index
    %132 = vector.load %arg12[%c0_88, %c0_89] : memref<8x1xf32, #tpu.memory_space<vmem>>, vector<8x1xf32>
    %cst_90 = arith.constant dense<0.000000e+00> : vector<32x1xf32>
    %133 = tpu.matmul %131, %132, %cst_90 {dimension_numbers = #tpu.dot_dimension_numbers<[1], [0], [0], [1], [0, 0, 1, 1], [], []>} : vector<32x8xf32>, vector<8x1xf32>, vector<32x1xf32> -> vector<32x1xf32>
    %c0_91 = arith.constant 0 : index
    %c0_92 = arith.constant 0 : index
    %134 = vector.load %arg13[%c0_91, %c0_92] : memref<1x1xf32, #tpu.memory_space<vmem>>, vector<1x1xf32>
    %135 = vector.broadcast %134 : vector<1x1xf32> to vector<32x1xf32>
    %136 = arith.addf %133, %135 : vector<32x1xf32>
    %137 = arith.negf %136 : vector<32x1xf32>
    %138 = math.exp %137 : vector<32x1xf32>
    %cst_93 = arith.constant 1.000000e+00 : f32
    %139 = vector.broadcast %cst_93 : f32 to vector<32x1xf32>
    %140 = arith.addf %139, %138 : vector<32x1xf32>
    %141 = arith.divf %139, %140 : vector<32x1xf32>
    %142 = vector.extract_strided_slice %141 {offsets = [0, 0], sizes = [16, 1], strides = [1, 1]} : vector<32x1xf32> to vector<16x1xf32>
    %143 = vector.extract_strided_slice %141 {offsets = [16, 0], sizes = [16, 1], strides = [1, 1]} : vector<32x1xf32> to vector<16x1xf32>
    %144 = arith.mulf %142, %143 : vector<16x1xf32>
    %145 = math.sqrt %144 : vector<16x1xf32>
    %146 = vector.extract_strided_slice %145 {offsets = [0, 0], sizes = [8, 1], strides = [1, 1]} : vector<16x1xf32> to vector<8x1xf32>
    %147 = vector.extract_strided_slice %145 {offsets = [8, 0], sizes = [8, 1], strides = [1, 1]} : vector<16x1xf32> to vector<8x1xf32>
    %148 = arith.maximumf %146, %147 : vector<8x1xf32>
    %c0_94 = arith.constant 0 : index
    %c0_95 = arith.constant 0 : index
    %149 = vector.load %arg14[%c0_94, %c0_95] : memref<8x1xf32, #tpu.memory_space<vmem>>, vector<8x1xf32>
    tpu.vector_store %arg14[%c0_94, %c0_95], %148 {strides = array<i32>} : memref<8x1xf32, #tpu.memory_space<vmem>>, vector<8x1xf32>,
    return
  }
  func.func @transform_0(%arg0: i32) -> (i32, i32, i32) {
    %c0_i32 = arith.constant 0 : i32
    %c0_i32_0 = arith.constant 0 : i32
    %c0_i32_1 = arith.constant 0 : i32
    return %c0_i32, %arg0, %c0_i32_0 : i32, i32, i32
  }
  func.func @transform_1(%arg0: i32) -> (i32, i32, i32) {
    %c0_i32 = arith.constant 0 : i32
    %c0_i32_0 = arith.constant 0 : i32
    %c0_i32_1 = arith.constant 0 : i32
    return %c0_i32, %arg0, %c0_i32_0 : i32, i32, i32
  }
  func.func @transform_2(%arg0: i32) -> (i32, i32) {
    %c0_i32 = arith.constant 0 : i32
    %c0_i32_0 = arith.constant 0 : i32
    %c0_i32_1 = arith.constant 0 : i32
    return %c0_i32, %c0_i32_0 : i32, i32
  }
  func.func @transform_3(%arg0: i32) -> (i32, i32) {
    %c0_i32 = arith.constant 0 : i32
    %c0_i32_0 = arith.constant 0 : i32
    %c0_i32_1 = arith.constant 0 : i32
    return %c0_i32, %c0_i32_0 : i32, i32
  }
  func.func @transform_4(%arg0: i32) -> (i32, i32) {
    %c0_i32 = arith.constant 0 : i32
    %c0_i32_0 = arith.constant 0 : i32
    %c0_i32_1 = arith.constant 0 : i32
    return %c0_i32, %c0_i32_0 : i32, i32
  }
  func.func @transform_5(%arg0: i32) -> (i32, i32) {
    %c0_i32 = arith.constant 0 : i32
    %c0_i32_0 = arith.constant 0 : i32
    %c0_i32_1 = arith.constant 0 : i32
    return %c0_i32, %c0_i32_0 : i32, i32
  }
  func.func @transform_6(%arg0: i32) -> (i32, i32) {
    %c0_i32 = arith.constant 0 : i32
    %c0_i32_0 = arith.constant 0 : i32
    %c0_i32_1 = arith.constant 0 : i32
    return %c0_i32, %c0_i32_0 : i32, i32
  }
  func.func @transform_7(%arg0: i32) -> (i32, i32) {
    %c0_i32 = arith.constant 0 : i32
    %c0_i32_0 = arith.constant 0 : i32
    %c0_i32_1 = arith.constant 0 : i32
    return %c0_i32, %c0_i32_0 : i32, i32
  }
  func.func @transform_8(%arg0: i32) -> (i32, i32) {
    %c0_i32 = arith.constant 0 : i32
    %c0_i32_0 = arith.constant 0 : i32
    %c0_i32_1 = arith.constant 0 : i32
    return %c0_i32, %c0_i32_0 : i32, i32
  }
  func.func @transform_9(%arg0: i32) -> (i32, i32) {
    %c0_i32 = arith.constant 0 : i32
    %c0_i32_0 = arith.constant 0 : i32
    %c0_i32_1 = arith.constant 0 : i32
    return %c0_i32, %c0_i32_0 : i32, i32
  }
  func.func @transform_10(%arg0: i32) -> (i32, i32) {
    %c0_i32 = arith.constant 0 : i32
    %c0_i32_0 = arith.constant 0 : i32
    %c0_i32_1 = arith.constant 0 : i32
    return %c0_i32, %c0_i32_0 : i32, i32
  }
  func.func @transform_11(%arg0: i32) -> (i32, i32) {
    %c0_i32 = arith.constant 0 : i32
    %c0_i32_0 = arith.constant 0 : i32
    %c0_i32_1 = arith.constant 0 : i32
    return %c0_i32, %c0_i32_0 : i32, i32
  }
  func.func @transform_12(%arg0: i32) -> (i32, i32) {
    %c0_i32 = arith.constant 0 : i32
    %c0_i32_0 = arith.constant 0 : i32
    %c0_i32_1 = arith.constant 0 : i32
    return %c0_i32, %c0_i32_0 : i32, i32
  }
  func.func @transform_13(%arg0: i32) -> (i32, i32) {
    %c0_i32 = arith.constant 0 : i32
    %c0_i32_0 = arith.constant 0 : i32
    return %arg0, %c0_i32 : i32, i32
  }
}

</mosaic_0001>

<llo_original>
// kernel: tpu_custom_call.1
$region0: #{tpu_custom_call.1}
  #allocation0 [shape = 'u32[]', space=smem, size = 0x4, offset = 0x4, fixed_abs, tag = 'smem constant byte address 0x4 - core index']
  #allocation1 [shape = 'u32[144,128]{1,0:T(1,128)}', space=vmem, size = 0x12000, scoped, tag = 'internal scratch']
  #allocation2 [shape = 'f32[1,1]{1,0:T(1,128)S(1)}', space=vmem, size = 0x200, scoped, tag = 'scoped memory for tpu_custom_call.1']
  #allocation3 [shape = 'f32[1,1]{1,0:T(1,128)S(1)}', space=vmem, size = 0x200, scoped, tag = 'scoped memory for tpu_custom_call.1']
  %s0 = inlined_call_operand.vmem [shape: f32[10,8,8], index: 0, kind: input, shape index: {}]
  %s1 = inlined_call_operand.vmem [shape: f32[10,8,8], index: 1, kind: input, shape index: {}]
  %s2 = inlined_call_operand.vmem [shape: f32[8,8], index: 2, kind: input, shape index: {}]
  %s3 = inlined_call_operand.vmem [shape: f32[8,8], index: 3, kind: input, shape index: {}]
  %s4 = inlined_call_operand.vmem [shape: f32[1,8], index: 4, kind: input, shape index: {}]
  %s5 = inlined_call_operand.vmem [shape: f32[8,4], index: 5, kind: input, shape index: {}]
  %s6 = inlined_call_operand.vmem [shape: f32[1,4], index: 6, kind: input, shape index: {}]
  %s7 = inlined_call_operand.vmem [shape: f32[4,1], index: 7, kind: input, shape index: {}]
  %s8 = inlined_call_operand.<no memory space> [shape: f32[1,1], index: 8, kind: input, shape index: {}]
  %s9 = inlined_call_operand.vmem [shape: f32[8,8], index: 9, kind: input, shape index: {}]
  %s10 = inlined_call_operand.vmem [shape: f32[1,8], index: 10, kind: input, shape index: {}]
  %s11 = inlined_call_operand.vmem [shape: f32[8,1], index: 11, kind: input, shape index: {}]
  %s12 = inlined_call_operand.<no memory space> [shape: f32[1,1], index: 12, kind: input, shape index: {}]
  %s13 = inlined_call_operand.vmem [shape: f32[8,1], index: 13, kind: output, shape index: {}]
  %s14 = sld [smem:[#allocation0]]
  $region62: #{tpu_custom_call.1} parent=0
    _
  %s16 = ssub.s32 1, %s14
  %s17 = scalar_select 0, %s16, %s14
  %v18 = vstv %s8
  %19 = vst [vmem:[#allocation2] sm:$0x1] %v18
  %v20 = vstv %s12
  %21 = vst [vmem:[#allocation3] sm:$0x1] %v20
  // Predicated region
  $region2: #{tpu_custom_call.1} parent=0 // pred_check
    _
  $region3: #{tpu_custom_call.1} parent=0 // pred_check_branch
    %23 = sbr.rel (0) target = $region5
  $region4: #{tpu_custom_call.1} parent=0 // pred_region
    _
  $region5: #{tpu_custom_call.1} parent=0 // pred_fallthru
    _
  // Predicated region
  $region6: #{tpu_custom_call.1} parent=0 // pred_check
    _
  $region7: #{tpu_custom_call.1} parent=0 // pred_check_branch
    %25 = sbr.rel (0) target = $region9
  $region8: #{tpu_custom_call.1} parent=0 // pred_region
    _
  $region9: #{tpu_custom_call.1} parent=0 // pred_fallthru
    _
  // Predicated region
  $region10: #{tpu_custom_call.1} parent=0 // pred_check
    _
  $region11: #{tpu_custom_call.1} parent=0 // pred_check_branch
    %27 = sbr.rel (0) target = $region13
  $region12: #{tpu_custom_call.1} parent=0 // pred_region
    _
  $region13: #{tpu_custom_call.1} parent=0 // pred_fallthru
    _
  // Predicated region
  $region14: #{tpu_custom_call.1} parent=0 // pred_check
    _
  $region15: #{tpu_custom_call.1} parent=0 // pred_check_branch
    %29 = sbr.rel (0) target = $region17
  $region16: #{tpu_custom_call.1} parent=0 // pred_region
    _
  $region17: #{tpu_custom_call.1} parent=0 // pred_fallthru
    _
  // Predicated region
  $region18: #{tpu_custom_call.1} parent=0 // pred_check
    _
  $region19: #{tpu_custom_call.1} parent=0 // pred_check_branch
    %31 = sbr.rel (0) target = $region21
  $region20: #{tpu_custom_call.1} parent=0 // pred_region
    _
  $region21: #{tpu_custom_call.1} parent=0 // pred_fallthru
    _
  // Predicated region
  $region22: #{tpu_custom_call.1} parent=0 // pred_check
    _
  $region23: #{tpu_custom_call.1} parent=0 // pred_check_branch
    %33 = sbr.rel (0) target = $region25
  $region24: #{tpu_custom_call.1} parent=0 // pred_region
    _
  $region25: #{tpu_custom_call.1} parent=0 // pred_fallthru
    _
  // Predicated region
  $region26: #{tpu_custom_call.1} parent=0 // pred_check
    _
  $region27: #{tpu_custom_call.1} parent=0 // pred_check_branch
    %35 = sbr.rel (0) target = $region29
  $region28: #{tpu_custom_call.1} parent=0 // pred_region
    _
  $region29: #{tpu_custom_call.1} parent=0 // pred_fallthru
    _
  // Predicated region
  $region30: #{tpu_custom_call.1} parent=0 // pred_check
    _
  $region31: #{tpu_custom_call.1} parent=0 // pred_check_branch
    %37 = sbr.rel (0) target = $region33
  $region32: #{tpu_custom_call.1} parent=0 // pred_region
    _
  $region33: #{tpu_custom_call.1} parent=0 // pred_fallthru
    _
  // Predicated region
  $region34: #{tpu_custom_call.1} parent=0 // pred_check
    _
  $region35: #{tpu_custom_call.1} parent=0 // pred_check_branch
    %39 = sbr.rel (0) target = $region37
  $region36: #{tpu_custom_call.1} parent=0 // pred_region
    _
  $region37: #{tpu_custom_call.1} parent=0 // pred_fallthru
    _
  // Predicated region
  $region38: #{tpu_custom_call.1} parent=0 // pred_check
    _
  $region39: #{tpu_custom_call.1} parent=0 // pred_check_branch
    %41 = sbr.rel (0) target = $region41
  $region40: #{tpu_custom_call.1} parent=0 // pred_region
    _
  $region41: #{tpu_custom_call.1} parent=0 // pred_fallthru
    _
  // Predicated region
  $region42: #{tpu_custom_call.1} parent=0 // pred_check
    _
  $region43: #{tpu_custom_call.1} parent=0 // pred_check_branch
    %43 = sbr.rel (0) target = $region45
  $region44: #{tpu_custom_call.1} parent=0 // pred_region
    _
  $region45: #{tpu_custom_call.1} parent=0 // pred_fallthru
    _
  // Predicated region
  $region46: #{tpu_custom_call.1} parent=0 // pred_check
    _
  $region47: #{tpu_custom_call.1} parent=0 // pred_check_branch
    %45 = sbr.rel (0) target = $region49
  $region48: #{tpu_custom_call.1} parent=0 // pred_region
    _
  $region49: #{tpu_custom_call.1} parent=0 // pred_fallthru
    _
  // Predicated region
  $region50: #{tpu_custom_call.1} parent=0 // pred_check
    _
  $region51: #{tpu_custom_call.1} parent=0 // pred_check_branch
    %47 = sbr.rel (0) target = $region53
  $region52: #{tpu_custom_call.1} parent=0 // pred_region
    _
  $region53: #{tpu_custom_call.1} parent=0 // pred_fallthru
    _
  %v48 = vld [vmem:[%s0] sm:$0xff]
  %s49 = scalar_lea.vmem %s0, 8
  %v50 = vld [vmem:[%s49] sm:$0xff]
  %s51 = scalar_lea.vmem %s0, 16
  %v52 = vld [vmem:[%s51] sm:$0xff]
  %s53 = scalar_lea.vmem %s0, 24
  %v54 = vld [vmem:[%s53] sm:$0xff]
  %s55 = scalar_lea.vmem %s0, 32
  %v56 = vld [vmem:[%s55] sm:$0xff]
  %s57 = scalar_lea.vmem %s0, 40
  %v58 = vld [vmem:[%s57] sm:$0xff]
  %s59 = scalar_lea.vmem %s0, 48
  %v60 = vld [vmem:[%s59] sm:$0xff]
  %s61 = scalar_lea.vmem %s0, 56
  %v62 = vld [vmem:[%s61] sm:$0xff]
  %s63 = scalar_lea.vmem %s0, 72
  %v64 = vld [vmem:[%s63] sm:$0xff]
  %s65 = scalar_lea.vmem %s0, 64
  %v66 = vld [vmem:[%s65] sm:$0xff]
  %v67 = vld [vmem:[%s1] sm:$0xff]
  %s68 = scalar_lea.vmem %s1, 8
  %v69 = vld [vmem:[%s68] sm:$0xff]
  %s70 = scalar_lea.vmem %s1, 16
  %v71 = vld [vmem:[%s70] sm:$0xff]
  %s72 = scalar_lea.vmem %s1, 24
  %v73 = vld [vmem:[%s72] sm:$0xff]
  %s74 = scalar_lea.vmem %s1, 32
  %v75 = vld [vmem:[%s74] sm:$0xff]
  %s76 = scalar_lea.vmem %s1, 40
  %v77 = vld [vmem:[%s76] sm:$0xff]
  %s78 = scalar_lea.vmem %s1, 48
  %v79 = vld [vmem:[%s78] sm:$0xff]
  %s80 = scalar_lea.vmem %s1, 56
  %v81 = vld [vmem:[%s80] sm:$0xff]
  %s82 = scalar_lea.vmem %s1, 72
  %v83 = vld [vmem:[%s82] sm:$0xff]
  %s84 = scalar_lea.vmem %s1, 64
  %v85 = vld [vmem:[%s84] sm:$0xff]
  %v86 = vld [vmem:[%s2] sm:$0xff]
  %v87 = vld [vmem:[%s3] sm:$0xff]
  %vm88 = vcmask 64512
  %v90 = vsel %vm88, %v50, 0
  %v93 = vsel %vm88, %v52, 0
  %v96 = vsel %vm88, %v54, 0
  %v99 = vsel %vm88, %v56, 0
  %v102 = vsel %vm88, %v58, 0
  %v105 = vsel %vm88, %v60, 0
  %v108 = vsel %vm88, %v62, 0
  %v111 = vsel %vm88, %v64, 0
  %v114 = vsel %vm88, %v66, 0
  %v117 = vsel %vm88, %v69, 0
  %v120 = vsel %vm88, %v71, 0
  %v123 = vsel %vm88, %v73, 0
  %v126 = vsel %vm88, %v75, 0
  %v129 = vsel %vm88, %v77, 0
  %v132 = vsel %vm88, %v79, 0
  %v135 = vsel %vm88, %v81, 0
  %v138 = vsel %vm88, %v83, 0
  %v141 = vsel %vm88, %v85, 0
  %143 = vmatprep.subr.mxu0 0.0
  %144 = vmatpush1.msra.mxu0 0.0
  %145 = vmatprep.subr.mxu0 0.0
  %146 = vmatpush1.msra.mxu0 0.0
  %147 = vmatprep.subr.mxu0 0.0
  %148 = vmatpush1.msra.mxu0 0.0
  %149 = vmatprep.subr.mxu0 0.0
  %150 = vmatpush1.msra.mxu0 0.0
  %151 = vmatprep.subr.mxu0 0.0
  %152 = vmatpush1.msra.mxu0 0.0
  %153 = vmatprep.subr.mxu0 0.0
  %154 = vmatpush1.msra.mxu0 0.0
  %155 = vmatprep.subr.mxu0 0.0
  %156 = vmatpush1.msra.mxu0 0.0
  %157 = vmatprep.subr.mxu0 0.0
  %158 = vmatpush1.msra.mxu0 0.0
  %159 = vmatprep.subr.mxu0 0.0
  %160 = vmatpush1.msra.mxu0 0.0
  %161 = vmatprep.subr.mxu0 0.0
  %162 = vmatpush1.msra.mxu0 0.0
  %163 = vmatprep.subr.mxu0 0.0
  %164 = vmatpush1.msra.mxu0 0.0
  %165 = vmatprep.subr.mxu0 0.0
  %166 = vmatpush1.msra.mxu0 0.0
  %167 = vmatprep.subr.mxu0 0.0
  %168 = vmatpush1.msra.mxu0 0.0
  %169 = vmatprep.subr.mxu0 0.0
  %170 = vmatpush1.msra.mxu0 0.0
  %171 = vmatprep.subr.mxu0 0.0
  %172 = vmatpush1.msra.mxu0 0.0
  %173 = vmatprep.subr.mxu0 0.0
  %174 = vmatpush1.msra.mxu0 %v87
  %175 = vmatprep.subr.mxu0 0.0
  %176 = vmatpush2.msra.mxu0 0.0
  %177 = vmatprep.subr.mxu0 0.0
  %178 = vmatpush2.msra.mxu0 0.0
  %179 = vmatprep.subr.mxu0 0.0
  %180 = vmatpush2.msra.mxu0 0.0
  %181 = vmatprep.subr.mxu0 0.0
  %182 = vmatpush2.msra.mxu0 0.0
  %183 = vmatprep.subr.mxu0 0.0
  %184 = vmatpush2.msra.mxu0 0.0
  %185 = vmatprep.subr.mxu0 0.0
  %186 = vmatpush2.msra.mxu0 0.0
  %187 = vmatprep.subr.mxu0 0.0
  %188 = vmatpush2.msra.mxu0 0.0
  %189 = vmatprep.subr.mxu0 0.0
  %190 = vmatpush2.msra.mxu0 0.0
  %191 = vmatprep.subr.mxu0 0.0
  %192 = vmatpush2.msra.mxu0 0.0
  %193 = vmatprep.subr.mxu0 0.0
  %194 = vmatpush2.msra.mxu0 0.0
  %195 = vmatprep.subr.mxu0 0.0
  %196 = vmatpush2.msra.mxu0 0.0
  %197 = vmatprep.subr.mxu0 0.0
  %198 = vmatpush2.msra.mxu0 0.0
  %199 = vmatprep.subr.mxu0 0.0
  %200 = vmatpush2.msra.mxu0 0.0
  %201 = vmatprep.subr.mxu0 0.0
  %202 = vmatpush2.msra.mxu0 0.0
  %203 = vmatprep.subr.mxu0 0.0
  %204 = vmatpush2.msra.mxu0 0.0
  %205 = vmatprep.subr.mxu0 0.0
  %206 = vmatpush2.msra.mxu0 0.0
  %207 = vmatprep.mubr.f32.mxu0 0.0
  %208 = vmatmul.mubr.f32.gmra.mxu0 %v90
  %v209 = vpop.f32.mrf.mxu0
  %v210 = vadd.f32 0.0, %v209
  %v211 = vpop.f32.mrf.mxu0
  %212 = vmatprep.mubr.f32.mxu0 0.0
  %213 = vmatmul.mubr.f32.gmra.mxu0 %v93
  %v214 = vpop.f32.mrf.mxu0
  %v215 = vadd.f32 0.0, %v214
  %v216 = vpop.f32.mrf.mxu0
  %217 = vmatprep.mubr.f32.mxu0 0.0
  %218 = vmatmul.mubr.f32.gmra.mxu0 %v96
  %v219 = vpop.f32.mrf.mxu0
  %v220 = vadd.f32 0.0, %v219
  %v221 = vpop.f32.mrf.mxu0
  %222 = vmatprep.mubr.f32.mxu0 0.0
  %223 = vmatmul.mubr.f32.gmra.mxu0 %v99
  %v224 = vpop.f32.mrf.mxu0
  %v225 = vadd.f32 0.0, %v224
  %v226 = vpop.f32.mrf.mxu0
  %227 = vmatprep.mubr.f32.mxu0 0.0
  %228 = vmatmul.mubr.f32.gmra.mxu0 %v102
  %v229 = vpop.f32.mrf.mxu0
  %v230 = vadd.f32 0.0, %v229
  %v231 = vpop.f32.mrf.mxu0
  %232 = vmatprep.mubr.f32.mxu0 0.0
  %233 = vmatmul.mubr.f32.gmra.mxu0 %v105
  %v234 = vpop.f32.mrf.mxu0
  %v235 = vadd.f32 0.0, %v234
  %v236 = vpop.f32.mrf.mxu0
  %237 = vmatprep.mubr.f32.mxu0 0.0
  %238 = vmatmul.mubr.f32.gmra.mxu0 %v108
  %v239 = vpop.f32.mrf.mxu0
  %v240 = vadd.f32 0.0, %v239
  %v241 = vpop.f32.mrf.mxu0
  %242 = vmatprep.mubr.f32.mxu0 0.0
  %243 = vmatmul.mubr.f32.gmra.mxu0 %v111
  %v244 = vpop.f32.mrf.mxu0
  %v245 = vadd.f32 0.0, %v244
  %v246 = vpop.f32.mrf.mxu0
  %247 = vmatprep.mubr.f32.mxu0 0.0
  %248 = vmatmul.mubr.f32.gmra.mxu0 %v114
  %v249 = vpop.f32.mrf.mxu0
  %v250 = vadd.f32 0.0, %v249
  %v251 = vpop.f32.mrf.mxu0
  %252 = vmatprep.mubr.f32.mxu0 0.0
  %253 = vmatmul.mubr.f32.gmra.mxu0 %v102
  %v254 = vpop.f32.mrf.mxu0
  %v255 = vadd.f32 0.0, %v254
  %v256 = vpop.f32.mrf.mxu0
  %257 = vmatprep.mubr.f32.mxu0 0.0
  %258 = vmatmul.mubr.f32.gmra.mxu0 %v117
  %v259 = vpop.f32.mrf.mxu0
  %v260 = vadd.f32 0.0, %v259
  %v261 = vpop.f32.mrf.mxu0
  %262 = vmatprep.mubr.f32.mxu0 0.0
  %263 = vmatmul.mubr.f32.gmra.mxu0 %v120
  %v264 = vpop.f32.mrf.mxu0
  %v265 = vadd.f32 0.0, %v264
  %v266 = vpop.f32.mrf.mxu0
  %267 = vmatprep.mubr.f32.mxu0 0.0
  %268 = vmatmul.mubr.f32.gmra.mxu0 %v123
  %v269 = vpop.f32.mrf.mxu0
  %v270 = vadd.f32 0.0, %v269
  %v271 = vpop.f32.mrf.mxu0
  %272 = vmatprep.mubr.f32.mxu0 0.0
  %273 = vmatmul.mubr.f32.gmra.mxu0 %v126
  %v274 = vpop.f32.mrf.mxu0
  %v275 = vadd.f32 0.0, %v274
  %v276 = vpop.f32.mrf.mxu0
  %277 = vmatprep.mubr.f32.mxu0 0.0
  %278 = vmatmul.mubr.f32.gmra.mxu0 %v129
  %v279 = vpop.f32.mrf.mxu0
  %v280 = vadd.f32 0.0, %v279
  %v281 = vpop.f32.mrf.mxu0
  %282 = vmatprep.mubr.f32.mxu0 0.0
  %283 = vmatmul.mubr.f32.gmra.mxu0 %v132
  %v284 = vpop.f32.mrf.mxu0
  %v285 = vadd.f32 0.0, %v284
  %v286 = vpop.f32.mrf.mxu0
  %287 = vmatprep.mubr.f32.mxu0 0.0
  %288 = vmatmul.mubr.f32.gmra.mxu0 %v135
  %v289 = vpop.f32.mrf.mxu0
  %v290 = vadd.f32 0.0, %v289
  %v291 = vpop.f32.mrf.mxu0
  %292 = vmatprep.mubr.f32.mxu0 0.0
  %293 = vmatmul.mubr.f32.gmra.mxu0 %v138
  %v294 = vpop.f32.mrf.mxu0
  %v295 = vadd.f32 0.0, %v294
  %v296 = vpop.f32.mrf.mxu0
  %297 = vmatprep.mubr.f32.mxu0 0.0
  %298 = vmatmul.mubr.f32.gmra.mxu0 %v141
  %v299 = vpop.f32.mrf.mxu0
  %v300 = vadd.f32 0.0, %v299
  %v301 = vpop.f32.mrf.mxu0
  %302 = vmatprep.mubr.f32.mxu0 0.0
  %303 = vmatmul.mubr.f32.gmra.mxu0 %v129
  %v304 = vpop.f32.mrf.mxu0
  %v305 = vadd.f32 0.0, %v304
  %v306 = vpop.f32.mrf.mxu0
  %307 = vdwg.mxu0
  %v309 = vsel %vm88, %v48, 0
  %v312 = vsel %vm88, %v67, 0
  %314 = vmatprep.subr.mxu0 0.0
  %315 = vmatpush1.msra.mxu0 0.0
  %316 = vmatprep.subr.mxu0 0.0
  %317 = vmatpush1.msra.mxu0 0.0
  %318 = vmatprep.subr.mxu0 0.0
  %319 = vmatpush1.msra.mxu0 0.0
  %320 = vmatprep.subr.mxu0 0.0
  %321 = vmatpush1.msra.mxu0 0.0
  %322 = vmatprep.subr.mxu0 0.0
  %323 = vmatpush1.msra.mxu0 0.0
  %324 = vmatprep.subr.mxu0 0.0
  %325 = vmatpush1.msra.mxu0 0.0
  %326 = vmatprep.subr.mxu0 0.0
  %327 = vmatpush1.msra.mxu0 0.0
  %328 = vmatprep.subr.mxu0 0.0
  %329 = vmatpush1.msra.mxu0 0.0
  %330 = vmatprep.subr.mxu0 0.0
  %331 = vmatpush1.msra.mxu0 0.0
  %332 = vmatprep.subr.mxu0 0.0
  %333 = vmatpush1.msra.mxu0 0.0
  %334 = vmatprep.subr.mxu0 0.0
  %335 = vmatpush1.msra.mxu0 0.0
  %336 = vmatprep.subr.mxu0 0.0
  %337 = vmatpush1.msra.mxu0 0.0
  %338 = vmatprep.subr.mxu0 0.0
  %339 = vmatpush1.msra.mxu0 0.0
  %340 = vmatprep.subr.mxu0 0.0
  %341 = vmatpush1.msra.mxu0 0.0
  %342 = vmatprep.subr.mxu0 0.0
  %343 = vmatpush1.msra.mxu0 0.0
  %344 = vmatprep.subr.mxu0 0.0
  %345 = vmatpush1.msra.mxu0 %v86
  %346 = vmatprep.subr.mxu0 0.0
  %347 = vmatpush2.msra.mxu0 0.0
  %348 = vmatprep.subr.mxu0 0.0
  %349 = vmatpush2.msra.mxu0 0.0
  %350 = vmatprep.subr.mxu0 0.0
  %351 = vmatpush2.msra.mxu0 0.0
  %352 = vmatprep.subr.mxu0 0.0
  %353 = vmatpush2.msra.mxu0 0.0
  %354 = vmatprep.subr.mxu0 0.0
  %355 = vmatpush2.msra.mxu0 0.0
  %356 = vmatprep.subr.mxu0 0.0
  %357 = vmatpush2.msra.mxu0 0.0
  %358 = vmatprep.subr.mxu0 0.0
  %359 = vmatpush2.msra.mxu0 0.0
  %360 = vmatprep.subr.mxu0 0.0
  %361 = vmatpush2.msra.mxu0 0.0
  %362 = vmatprep.subr.mxu0 0.0
  %363 = vmatpush2.msra.mxu0 0.0
  %364 = vmatprep.subr.mxu0 0.0
  %365 = vmatpush2.msra.mxu0 0.0
  %366 = vmatprep.subr.mxu0 0.0
  %367 = vmatpush2.msra.mxu0 0.0
  %368 = vmatprep.subr.mxu0 0.0
  %369 = vmatpush2.msra.mxu0 0.0
  %370 = vmatprep.subr.mxu0 0.0
  %371 = vmatpush2.msra.mxu0 0.0
  %372 = vmatprep.subr.mxu0 0.0
  %373 = vmatpush2.msra.mxu0 0.0
  %374 = vmatprep.subr.mxu0 0.0
  %375 = vmatpush2.msra.mxu0 0.0
  %376 = vmatprep.subr.mxu0 0.0
  %377 = vmatpush2.msra.mxu0 0.0
  %378 = vmatprep.mubr.f32.mxu0 0.0
  %379 = vmatmul.mubr.f32.gmra.mxu0 %v309
  %v380 = vpop.f32.mrf.mxu0
  %v381 = vadd.f32 %v210, %v380
  %v382 = vpop.f32.mrf.mxu0
  %383 = vmatprep.mubr.f32.mxu0 0.0
  %384 = vmatmul.mubr.f32.gmra.mxu0 %v90
  %v385 = vpop.f32.mrf.mxu0
  %v386 = vadd.f32 %v215, %v385
  %v387 = vpop.f32.mrf.mxu0
  %388 = vmatprep.mubr.f32.mxu0 0.0
  %389 = vmatmul.mubr.f32.gmra.mxu0 %v93
  %v390 = vpop.f32.mrf.mxu0
  %v391 = vadd.f32 %v220, %v390
  %v392 = vpop.f32.mrf.mxu0
  %393 = vmatprep.mubr.f32.mxu0 0.0
  %394 = vmatmul.mubr.f32.gmra.mxu0 %v96
  %v395 = vpop.f32.mrf.mxu0
  %v396 = vadd.f32 %v225, %v395
  %v397 = vpop.f32.mrf.mxu0
  %398 = vmatprep.mubr.f32.mxu0 0.0
  %399 = vmatmul.mubr.f32.gmra.mxu0 %v99
  %v400 = vpop.f32.mrf.mxu0
  %v401 = vadd.f32 %v230, %v400
  %v402 = vpop.f32.mrf.mxu0
  %403 = vmatprep.mubr.f32.mxu0 0.0
  %404 = vmatmul.mubr.f32.gmra.mxu0 %v102
  %v405 = vpop.f32.mrf.mxu0
  %v406 = vadd.f32 %v235, %v405
  %v407 = vpop.f32.mrf.mxu0
  %408 = vmatprep.mubr.f32.mxu0 0.0
  %409 = vmatmul.mubr.f32.gmra.mxu0 %v105
  %v410 = vpop.f32.mrf.mxu0
  %v411 = vadd.f32 %v240, %v410
  %v412 = vpop.f32.mrf.mxu0
  %413 = vmatprep.mubr.f32.mxu0 0.0
  %414 = vmatmul.mubr.f32.gmra.mxu0 %v108
  %v415 = vpop.f32.mrf.mxu0
  %v416 = vadd.f32 %v245, %v415
  %v417 = vpop.f32.mrf.mxu0
  %418 = vmatprep.mubr.f32.mxu0 0.0
  %419 = vmatmul.mubr.f32.gmra.mxu0 %v96
  %v420 = vpop.f32.mrf.mxu0
  %v421 = vadd.f32 %v250, %v420
  %v422 = vpop.f32.mrf.mxu0
  %423 = vmatprep.mubr.f32.mxu0 0.0
  %424 = vmatmul.mubr.f32.gmra.mxu0 %v114
  %v425 = vpop.f32.mrf.mxu0
  %v426 = vadd.f32 %v255, %v425
  %v427 = vpop.f32.mrf.mxu0
  %428 = vmatprep.mubr.f32.mxu0 0.0
  %429 = vmatmul.mubr.f32.gmra.mxu0 %v312
  %v430 = vpop.f32.mrf.mxu0
  %v431 = vadd.f32 %v260, %v430
  %v432 = vpop.f32.mrf.mxu0
  %433 = vmatprep.mubr.f32.mxu0 0.0
  %434 = vmatmul.mubr.f32.gmra.mxu0 %v117
  %v435 = vpop.f32.mrf.mxu0
  %v436 = vadd.f32 %v265, %v435
  %v437 = vpop.f32.mrf.mxu0
  %438 = vmatprep.mubr.f32.mxu0 0.0
  %439 = vmatmul.mubr.f32.gmra.mxu0 %v120
  %v440 = vpop.f32.mrf.mxu0
  %v441 = vadd.f32 %v270, %v440
  %v442 = vpop.f32.mrf.mxu0
  %443 = vmatprep.mubr.f32.mxu0 0.0
  %444 = vmatmul.mubr.f32.gmra.mxu0 %v123
  %v445 = vpop.f32.mrf.mxu0
  %v446 = vadd.f32 %v275, %v445
  %v447 = vpop.f32.mrf.mxu0
  %448 = vmatprep.mubr.f32.mxu0 0.0
  %449 = vmatmul.mubr.f32.gmra.mxu0 %v126
  %v450 = vpop.f32.mrf.mxu0
  %v451 = vadd.f32 %v280, %v450
  %v452 = vpop.f32.mrf.mxu0
  %453 = vmatprep.mubr.f32.mxu0 0.0
  %454 = vmatmul.mubr.f32.gmra.mxu0 %v129
  %v455 = vpop.f32.mrf.mxu0
  %v456 = vadd.f32 %v285, %v455
  %v457 = vpop.f32.mrf.mxu0
  %458 = vmatprep.mubr.f32.mxu0 0.0
  %459 = vmatmul.mubr.f32.gmra.mxu0 %v132
  %v460 = vpop.f32.mrf.mxu0
  %v461 = vadd.f32 %v290, %v460
  %v462 = vpop.f32.mrf.mxu0
  %463 = vmatprep.mubr.f32.mxu0 0.0
  %464 = vmatmul.mubr.f32.gmra.mxu0 %v135
  %v465 = vpop.f32.mrf.mxu0
  %v466 = vadd.f32 %v295, %v465
  %v467 = vpop.f32.mrf.mxu0
  %468 = vmatprep.mubr.f32.mxu0 0.0
  %469 = vmatmul.mubr.f32.gmra.mxu0 %v123
  %v470 = vpop.f32.mrf.mxu0
  %v471 = vadd.f32 %v300, %v470
  %v472 = vpop.f32.mrf.mxu0
  %473 = vmatprep.mubr.f32.mxu0 0.0
  %474 = vmatmul.mubr.f32.gmra.mxu0 %v141
  %v475 = vpop.f32.mrf.mxu0
  %v476 = vadd.f32 %v305, %v475
  %v477 = vpop.f32.mrf.mxu0
  %478 = vdwg.mxu0
  %v479 = vld [vmem:[%s4] sm:$0x1]
  %v481 = vlaneseq
  %v482 = vshrl.u32 %v481, 7
  %v483 = vsub.s32 0, %v482
  %v484 = vrot.slane %v479, %v483
  %v486 = vadd.f32 %v381, %v484
  %v487 = vadd.f32 %v386, %v484
  %v488 = vadd.f32 %v391, %v484
  %v489 = vadd.f32 %v396, %v484
  %v490 = vadd.f32 %v401, %v484
  %v491 = vadd.f32 %v406, %v484
  %v492 = vadd.f32 %v411, %v484
  %v493 = vadd.f32 %v416, %v484
  %v494 = vadd.f32 %v421, %v484
  %v495 = vadd.f32 %v426, %v484
  %v496 = vadd.f32 %v431, %v484
  %v497 = vadd.f32 %v436, %v484
  %v498 = vadd.f32 %v441, %v484
  %v499 = vadd.f32 %v446, %v484
  %v500 = vadd.f32 %v451, %v484
  %v501 = vadd.f32 %v456, %v484
  %v502 = vadd.f32 %v461, %v484
  %v503 = vadd.f32 %v466, %v484
  %v504 = vadd.f32 %v471, %v484
  %v505 = vadd.f32 %v476, %v484
  %v506 = vmax.f32 %v486, 0.0
  %v507 = vmax.f32 %v487, 0.0
  %v508 = vmax.f32 %v488, 0.0
  %v509 = vmax.f32 %v489, 0.0
  %v510 = vmax.f32 %v490, 0.0
  %v511 = vmax.f32 %v491, 0.0
  %v512 = vmax.f32 %v492, 0.0
  %v513 = vmax.f32 %v493, 0.0
  %v514 = vmax.f32 %v494, 0.0
  %v515 = vmax.f32 %v495, 0.0
  %v516 = vmax.f32 %v496, 0.0
  %v517 = vmax.f32 %v497, 0.0
  %v518 = vmax.f32 %v498, 0.0
  %v519 = vmax.f32 %v499, 0.0
  %v520 = vmax.f32 %v500, 0.0
  %v521 = vmax.f32 %v501, 0.0
  %v522 = vmax.f32 %v502, 0.0
  %v523 = vmax.f32 %v503, 0.0
  %v524 = vmax.f32 %v504, 0.0
  %v525 = vmax.f32 %v505, 0.0
  %v526 = vld [vmem:[%s5] sm:$0xff]
  %v527 = vld [vmem:[%s6] sm:$0x1]
  %v529 = vlaneseq
  %v530 = vshrl.u32 %v529, 7
  %v531 = vsub.s32 0, %v530
  %v532 = vrot.slane %v527, %v531
  %v535 = vsel %vm88, %v506, 0
  %v538 = vsel %vm88, %v507, 0
  %v541 = vsel %vm88, %v508, 0
  %v544 = vsel %vm88, %v509, 0
  %v547 = vsel %vm88, %v510, 0
  %v550 = vsel %vm88, %v511, 0
  %v553 = vsel %vm88, %v512, 0
  %v556 = vsel %vm88, %v513, 0
  %v559 = vsel %vm88, %v514, 0
  %v562 = vsel %vm88, %v515, 0
  %v565 = vsel %vm88, %v516, 0
  %v568 = vsel %vm88, %v517, 0
  %v571 = vsel %vm88, %v518, 0
  %v574 = vsel %vm88, %v519, 0
  %v577 = vsel %vm88, %v520, 0
  %v580 = vsel %vm88, %v521, 0
  %v583 = vsel %vm88, %v522, 0
  %v586 = vsel %vm88, %v523, 0
  %v589 = vsel %vm88, %v524, 0
  %v592 = vsel %vm88, %v525, 0
  %594 = vmatprep.subr.mxu0 0.0
  %595 = vmatpush1.msra.mxu0 0.0
  %596 = vmatprep.subr.mxu0 0.0
  %597 = vmatpush1.msra.mxu0 0.0
  %598 = vmatprep.subr.mxu0 0.0
  %599 = vmatpush1.msra.mxu0 0.0
  %600 = vmatprep.subr.mxu0 0.0
  %601 = vmatpush1.msra.mxu0 0.0
  %602 = vmatprep.subr.mxu0 0.0
  %603 = vmatpush1.msra.mxu0 0.0
  %604 = vmatprep.subr.mxu0 0.0
  %605 = vmatpush1.msra.mxu0 0.0
  %606 = vmatprep.subr.mxu0 0.0
  %607 = vmatpush1.msra.mxu0 0.0
  %608 = vmatprep.subr.mxu0 0.0
  %609 = vmatpush1.msra.mxu0 0.0
  %610 = vmatprep.subr.mxu0 0.0
  %611 = vmatpush1.msra.mxu0 0.0
  %612 = vmatprep.subr.mxu0 0.0
  %613 = vmatpush1.msra.mxu0 0.0
  %614 = vmatprep.subr.mxu0 0.0
  %615 = vmatpush1.msra.mxu0 0.0
  %616 = vmatprep.subr.mxu0 0.0
  %617 = vmatpush1.msra.mxu0 0.0
  %618 = vmatprep.subr.mxu0 0.0
  %619 = vmatpush1.msra.mxu0 0.0
  %620 = vmatprep.subr.mxu0 0.0
  %621 = vmatpush1.msra.mxu0 0.0
  %622 = vmatprep.subr.mxu0 0.0
  %623 = vmatpush1.msra.mxu0 0.0
  %624 = vmatprep.subr.mxu0 0.0
  %625 = vmatpush1.msra.mxu0 %v526
  %626 = vmatprep.subr.mxu0 0.0
  %627 = vmatpush2.msra.mxu0 0.0
  %628 = vmatprep.subr.mxu0 0.0
  %629 = vmatpush2.msra.mxu0 0.0
  %630 = vmatprep.subr.mxu0 0.0
  %631 = vmatpush2.msra.mxu0 0.0
  %632 = vmatprep.subr.mxu0 0.0
  %633 = vmatpush2.msra.mxu0 0.0
  %634 = vmatprep.subr.mxu0 0.0
  %635 = vmatpush2.msra.mxu0 0.0
  %636 = vmatprep.subr.mxu0 0.0
  %637 = vmatpush2.msra.mxu0 0.0
  %638 = vmatprep.subr.mxu0 0.0
  %639 = vmatpush2.msra.mxu0 0.0
  %640 = vmatprep.subr.mxu0 0.0
  %641 = vmatpush2.msra.mxu0 0.0
  %642 = vmatprep.subr.mxu0 0.0
  %643 = vmatpush2.msra.mxu0 0.0
  %644 = vmatprep.subr.mxu0 0.0
  %645 = vmatpush2.msra.mxu0 0.0
  %646 = vmatprep.subr.mxu0 0.0
  %647 = vmatpush2.msra.mxu0 0.0
  %648 = vmatprep.subr.mxu0 0.0
  %649 = vmatpush2.msra.mxu0 0.0
  %650 = vmatprep.subr.mxu0 0.0
  %651 = vmatpush2.msra.mxu0 0.0
  %652 = vmatprep.subr.mxu0 0.0
  %653 = vmatpush2.msra.mxu0 0.0
  %654 = vmatprep.subr.mxu0 0.0
  %655 = vmatpush2.msra.mxu0 0.0
  %656 = vmatprep.subr.mxu0 0.0
  %657 = vmatpush2.msra.mxu0 0.0
  %658 = vmatprep.mubr.f32.mxu0 0.0
  %659 = vmatmul.mubr.f32.gmra.mxu0 %v535
  %v660 = vpop.f32.mrf.mxu0
  %v661 = vadd.f32 %v532, %v660
  %v662 = vpop.f32.mrf.mxu0
  %663 = vmatprep.mubr.f32.mxu0 0.0
  %664 = vmatmul.mubr.f32.gmra.mxu0 %v538
  %v665 = vpop.f32.mrf.mxu0
  %v666 = vadd.f32 %v532, %v665
  %v667 = vpop.f32.mrf.mxu0
  %668 = vmatprep.mubr.f32.mxu0 0.0
  %669 = vmatmul.mubr.f32.gmra.mxu0 %v541
  %v670 = vpop.f32.mrf.mxu0
  %v671 = vadd.f32 %v532, %v670
  %v672 = vpop.f32.mrf.mxu0
  %673 = vmatprep.mubr.f32.mxu0 0.0
  %674 = vmatmul.mubr.f32.gmra.mxu0 %v544
  %v675 = vpop.f32.mrf.mxu0
  %v676 = vadd.f32 %v532, %v675
  %v677 = vpop.f32.mrf.mxu0
  %678 = vmatprep.mubr.f32.mxu0 0.0
  %679 = vmatmul.mubr.f32.gmra.mxu0 %v547
  %v680 = vpop.f32.mrf.mxu0
  %v681 = vadd.f32 %v532, %v680
  %v682 = vpop.f32.mrf.mxu0
  %683 = vmatprep.mubr.f32.mxu0 0.0
  %684 = vmatmul.mubr.f32.gmra.mxu0 %v550
  %v685 = vpop.f32.mrf.mxu0
  %v686 = vadd.f32 %v532, %v685
  %v687 = vpop.f32.mrf.mxu0
  %688 = vmatprep.mubr.f32.mxu0 0.0
  %689 = vmatmul.mubr.f32.gmra.mxu0 %v553
  %v690 = vpop.f32.mrf.mxu0
  %v691 = vadd.f32 %v532, %v690
  %v692 = vpop.f32.mrf.mxu0
  %693 = vmatprep.mubr.f32.mxu0 0.0
  %694 = vmatmul.mubr.f32.gmra.mxu0 %v556
  %v695 = vpop.f32.mrf.mxu0
  %v696 = vadd.f32 %v532, %v695
  %v697 = vpop.f32.mrf.mxu0
  %698 = vmatprep.mubr.f32.mxu0 0.0
  %699 = vmatmul.mubr.f32.gmra.mxu0 %v559
  %v700 = vpop.f32.mrf.mxu0
  %v701 = vadd.f32 %v532, %v700
  %v702 = vpop.f32.mrf.mxu0
  %703 = vmatprep.mubr.f32.mxu0 0.0
  %704 = vmatmul.mubr.f32.gmra.mxu0 %v562
  %v705 = vpop.f32.mrf.mxu0
  %v706 = vadd.f32 %v532, %v705
  %v707 = vpop.f32.mrf.mxu0
  %708 = vmatprep.mubr.f32.mxu0 0.0
  %709 = vmatmul.mubr.f32.gmra.mxu0 %v565
  %v710 = vpop.f32.mrf.mxu0
  %v711 = vadd.f32 %v532, %v710
  %v712 = vpop.f32.mrf.mxu0
  %713 = vmatprep.mubr.f32.mxu0 0.0
  %714 = vmatmul.mubr.f32.gmra.mxu0 %v568
  %v715 = vpop.f32.mrf.mxu0
  %v716 = vadd.f32 %v532, %v715
  %v717 = vpop.f32.mrf.mxu0
  %718 = vmatprep.mubr.f32.mxu0 0.0
  %719 = vmatmul.mubr.f32.gmra.mxu0 %v571
  %v720 = vpop.f32.mrf.mxu0
  %v721 = vadd.f32 %v532, %v720
  %v722 = vpop.f32.mrf.mxu0
  %723 = vmatprep.mubr.f32.mxu0 0.0
  %724 = vmatmul.mubr.f32.gmra.mxu0 %v574
  %v725 = vpop.f32.mrf.mxu0
  %v726 = vadd.f32 %v532, %v725
  %v727 = vpop.f32.mrf.mxu0
  %728 = vmatprep.mubr.f32.mxu0 0.0
  %729 = vmatmul.mubr.f32.gmra.mxu0 %v577
  %v730 = vpop.f32.mrf.mxu0
  %v731 = vadd.f32 %v532, %v730
  %v732 = vpop.f32.mrf.mxu0
  %733 = vmatprep.mubr.f32.mxu0 0.0
  %734 = vmatmul.mubr.f32.gmra.mxu0 %v580
  %v735 = vpop.f32.mrf.mxu0
  %v736 = vadd.f32 %v532, %v735
  %v737 = vpop.f32.mrf.mxu0
  %738 = vmatprep.mubr.f32.mxu0 0.0
  %739 = vmatmul.mubr.f32.gmra.mxu0 %v583
  %v740 = vpop.f32.mrf.mxu0
  %v741 = vadd.f32 %v532, %v740
  %v742 = vpop.f32.mrf.mxu0
  %743 = vmatprep.mubr.f32.mxu0 0.0
  %744 = vmatmul.mubr.f32.gmra.mxu0 %v586
  %v745 = vpop.f32.mrf.mxu0
  %v746 = vadd.f32 %v532, %v745
  %v747 = vpop.f32.mrf.mxu0
  %748 = vmatprep.mubr.f32.mxu0 0.0
  %749 = vmatmul.mubr.f32.gmra.mxu0 %v589
  %v750 = vpop.f32.mrf.mxu0
  %v751 = vadd.f32 %v532, %v750
  %v752 = vpop.f32.mrf.mxu0
  %753 = vmatprep.mubr.f32.mxu0 0.0
  %754 = vmatmul.mubr.f32.gmra.mxu0 %v592
  %v755 = vpop.f32.mrf.mxu0
  %v756 = vadd.f32 %v532, %v755
  %v757 = vpop.f32.mrf.mxu0
  %758 = vdwg.mxu0
  %v759 = vmax.f32 %v661, 0.0
  %v760 = vmax.f32 %v666, 0.0
  %v761 = vmax.f32 %v671, 0.0
  %v762 = vmax.f32 %v676, 0.0
  %v763 = vmax.f32 %v681, 0.0
  %v764 = vmax.f32 %v686, 0.0
  %v765 = vmax.f32 %v691, 0.0
  %v766 = vmax.f32 %v696, 0.0
  %v767 = vmax.f32 %v701, 0.0
  %v768 = vmax.f32 %v706, 0.0
  %v769 = vmax.f32 %v711, 0.0
  %v770 = vmax.f32 %v716, 0.0
  %v771 = vmax.f32 %v721, 0.0
  %v772 = vmax.f32 %v726, 0.0
  %v773 = vmax.f32 %v731, 0.0
  %v774 = vmax.f32 %v736, 0.0
  %v775 = vmax.f32 %v741, 0.0
  %v776 = vmax.f32 %v746, 0.0
  %v777 = vmax.f32 %v751, 0.0
  %v778 = vmax.f32 %v756, 0.0
  %v779 = vld [vmem:[%s7] sm:$0xf]
  %vm780 = vcmask 31744
  %v782 = vsel %vm780, %v759, 0
  %v785 = vsel %vm780, %v760, 0
  %v788 = vsel %vm780, %v761, 0
  %v791 = vsel %vm780, %v762, 0
  %v794 = vsel %vm780, %v763, 0
  %v797 = vsel %vm780, %v764, 0
  %v800 = vsel %vm780, %v765, 0
  %v803 = vsel %vm780, %v766, 0
  %v806 = vsel %vm780, %v767, 0
  %v809 = vsel %vm780, %v768, 0
  %v812 = vsel %vm780, %v769, 0
  %v815 = vsel %vm780, %v770, 0
  %v818 = vsel %vm780, %v771, 0
  %v821 = vsel %vm780, %v772, 0
  %v824 = vsel %vm780, %v773, 0
  %v827 = vsel %vm780, %v774, 0
  %v830 = vsel %vm780, %v775, 0
  %v833 = vsel %vm780, %v776, 0
  %v836 = vsel %vm780, %v777, 0
  %v839 = vsel %vm780, %v778, 0
  %vm841 = vcmask 1043456
  %v843 = vsel %vm841, %v779, 0
  %845 = vmatprep.subr.mxu0 0.0
  %846 = vmatpush1.msra.mxu0 0.0
  %847 = vmatprep.subr.mxu0 0.0
  %848 = vmatpush1.msra.mxu0 0.0
  %849 = vmatprep.subr.mxu0 0.0
  %850 = vmatpush1.msra.mxu0 0.0
  %851 = vmatprep.subr.mxu0 0.0
  %852 = vmatpush1.msra.mxu0 0.0
  %853 = vmatprep.subr.mxu0 0.0
  %854 = vmatpush1.msra.mxu0 0.0
  %855 = vmatprep.subr.mxu0 0.0
  %856 = vmatpush1.msra.mxu0 0.0
  %857 = vmatprep.subr.mxu0 0.0
  %858 = vmatpush1.msra.mxu0 0.0
  %859 = vmatprep.subr.mxu0 0.0
  %860 = vmatpush1.msra.mxu0 0.0
  %861 = vmatprep.subr.mxu0 0.0
  %862 = vmatpush1.msra.mxu0 0.0
  %863 = vmatprep.subr.mxu0 0.0
  %864 = vmatpush1.msra.mxu0 0.0
  %865 = vmatprep.subr.mxu0 0.0
  %866 = vmatpush1.msra.mxu0 0.0
  %867 = vmatprep.subr.mxu0 0.0
  %868 = vmatpush1.msra.mxu0 0.0
  %869 = vmatprep.subr.mxu0 0.0
  %870 = vmatpush1.msra.mxu0 0.0
  %871 = vmatprep.subr.mxu0 0.0
  %872 = vmatpush1.msra.mxu0 0.0
  %873 = vmatprep.subr.mxu0 0.0
  %874 = vmatpush1.msra.mxu0 0.0
  %875 = vmatprep.subr.mxu0 0.0
  %876 = vmatpush1.msra.mxu0 %v843
  %877 = vmatprep.subr.mxu0 0.0
  %878 = vmatpush2.msra.mxu0 0.0
  %879 = vmatprep.subr.mxu0 0.0
  %880 = vmatpush2.msra.mxu0 0.0
  %881 = vmatprep.subr.mxu0 0.0
  %882 = vmatpush2.msra.mxu0 0.0
  %883 = vmatprep.subr.mxu0 0.0
  %884 = vmatpush2.msra.mxu0 0.0
  %885 = vmatprep.subr.mxu0 0.0
  %886 = vmatpush2.msra.mxu0 0.0
  %887 = vmatprep.subr.mxu0 0.0
  %888 = vmatpush2.msra.mxu0 0.0
  %889 = vmatprep.subr.mxu0 0.0
  %890 = vmatpush2.msra.mxu0 0.0
  %891 = vmatprep.subr.mxu0 0.0
  %892 = vmatpush2.msra.mxu0 0.0
  %893 = vmatprep.subr.mxu0 0.0
  %894 = vmatpush2.msra.mxu0 0.0
  %895 = vmatprep.subr.mxu0 0.0
  %896 = vmatpush2.msra.mxu0 0.0
  %897 = vmatprep.subr.mxu0 0.0
  %898 = vmatpush2.msra.mxu0 0.0
  %899 = vmatprep.subr.mxu0 0.0
  %900 = vmatpush2.msra.mxu0 0.0
  %901 = vmatprep.subr.mxu0 0.0
  %902 = vmatpush2.msra.mxu0 0.0
  %903 = vmatprep.subr.mxu0 0.0
  %904 = vmatpush2.msra.mxu0 0.0
  %905 = vmatprep.subr.mxu0 0.0
  %906 = vmatpush2.msra.mxu0 0.0
  %907 = vmatprep.subr.mxu0 0.0
  %908 = vmatpush2.msra.mxu0 0.0
  %909 = vmatprep.mubr.f32.mxu0 0.0
  %910 = vmatmul.mubr.f32.gmra.mxu0 %v782
  %v911 = vpop.f32.mrf.mxu0
  %v912 = vadd.f32 0.0, %v911
  %v913 = vpop.f32.mrf.mxu0
  %914 = vmatprep.mubr.f32.mxu0 0.0
  %915 = vmatmul.mubr.f32.gmra.mxu0 %v785
  %v916 = vpop.f32.mrf.mxu0
  %v917 = vadd.f32 0.0, %v916
  %v918 = vpop.f32.mrf.mxu0
  %919 = vmatprep.mubr.f32.mxu0 0.0
  %920 = vmatmul.mubr.f32.gmra.mxu0 %v788
  %v921 = vpop.f32.mrf.mxu0
  %v922 = vadd.f32 0.0, %v921
  %v923 = vpop.f32.mrf.mxu0
  %924 = vmatprep.mubr.f32.mxu0 0.0
  %925 = vmatmul.mubr.f32.gmra.mxu0 %v791
  %v926 = vpop.f32.mrf.mxu0
  %v927 = vadd.f32 0.0, %v926
  %v928 = vpop.f32.mrf.mxu0
  %929 = vmatprep.mubr.f32.mxu0 0.0
  %930 = vmatmul.mubr.f32.gmra.mxu0 %v794
  %v931 = vpop.f32.mrf.mxu0
  %v932 = vadd.f32 0.0, %v931
  %v933 = vpop.f32.mrf.mxu0
  %934 = vmatprep.mubr.f32.mxu0 0.0
  %935 = vmatmul.mubr.f32.gmra.mxu0 %v797
  %v936 = vpop.f32.mrf.mxu0
  %v937 = vadd.f32 0.0, %v936
  %v938 = vpop.f32.mrf.mxu0
  %939 = vmatprep.mubr.f32.mxu0 0.0
  %940 = vmatmul.mubr.f32.gmra.mxu0 %v800
  %v941 = vpop.f32.mrf.mxu0
  %v942 = vadd.f32 0.0, %v941
  %v943 = vpop.f32.mrf.mxu0
  %944 = vmatprep.mubr.f32.mxu0 0.0
  %945 = vmatmul.mubr.f32.gmra.mxu0 %v803
  %v946 = vpop.f32.mrf.mxu0
  %v947 = vadd.f32 0.0, %v946
  %v948 = vpop.f32.mrf.mxu0
  %949 = vmatprep.mubr.f32.mxu0 0.0
  %950 = vmatmul.mubr.f32.gmra.mxu0 %v806
  %v951 = vpop.f32.mrf.mxu0
  %v952 = vadd.f32 0.0, %v951
  %v953 = vpop.f32.mrf.mxu0
  %954 = vmatprep.mubr.f32.mxu0 0.0
  %955 = vmatmul.mubr.f32.gmra.mxu0 %v809
  %v956 = vpop.f32.mrf.mxu0
  %v957 = vadd.f32 0.0, %v956
  %v958 = vpop.f32.mrf.mxu0
  %959 = vmatprep.mubr.f32.mxu0 0.0
  %960 = vmatmul.mubr.f32.gmra.mxu0 %v812
  %v961 = vpop.f32.mrf.mxu0
  %v962 = vadd.f32 0.0, %v961
  %v963 = vpop.f32.mrf.mxu0
  %964 = vmatprep.mubr.f32.mxu0 0.0
  %965 = vmatmul.mubr.f32.gmra.mxu0 %v815
  %v966 = vpop.f32.mrf.mxu0
  %v967 = vadd.f32 0.0, %v966
  %v968 = vpop.f32.mrf.mxu0
  %969 = vmatprep.mubr.f32.mxu0 0.0
  %970 = vmatmul.mubr.f32.gmra.mxu0 %v818
  %v971 = vpop.f32.mrf.mxu0
  %v972 = vadd.f32 0.0, %v971
  %v973 = vpop.f32.mrf.mxu0
  %974 = vmatprep.mubr.f32.mxu0 0.0
  %975 = vmatmul.mubr.f32.gmra.mxu0 %v821
  %v976 = vpop.f32.mrf.mxu0
  %v977 = vadd.f32 0.0, %v976
  %v978 = vpop.f32.mrf.mxu0
  %979 = vmatprep.mubr.f32.mxu0 0.0
  %980 = vmatmul.mubr.f32.gmra.mxu0 %v824
  %v981 = vpop.f32.mrf.mxu0
  %v982 = vadd.f32 0.0, %v981
  %v983 = vpop.f32.mrf.mxu0
  %984 = vmatprep.mubr.f32.mxu0 0.0
  %985 = vmatmul.mubr.f32.gmra.mxu0 %v827
  %v986 = vpop.f32.mrf.mxu0
  %v987 = vadd.f32 0.0, %v986
  %v988 = vpop.f32.mrf.mxu0
  %989 = vmatprep.mubr.f32.mxu0 0.0
  %990 = vmatmul.mubr.f32.gmra.mxu0 %v830
  %v991 = vpop.f32.mrf.mxu0
  %v992 = vadd.f32 0.0, %v991
  %v993 = vpop.f32.mrf.mxu0
  %994 = vmatprep.mubr.f32.mxu0 0.0
  %995 = vmatmul.mubr.f32.gmra.mxu0 %v833
  %v996 = vpop.f32.mrf.mxu0
  %v997 = vadd.f32 0.0, %v996
  %v998 = vpop.f32.mrf.mxu0
  %999 = vmatprep.mubr.f32.mxu0 0.0
  %1000 = vmatmul.mubr.f32.gmra.mxu0 %v836
  %v1001 = vpop.f32.mrf.mxu0
  %v1002 = vadd.f32 0.0, %v1001
  %v1003 = vpop.f32.mrf.mxu0
  %1004 = vmatprep.mubr.f32.mxu0 0.0
  %1005 = vmatmul.mubr.f32.gmra.mxu0 %v839
  %v1006 = vpop.f32.mrf.mxu0
  %v1007 = vadd.f32 0.0, %v1006
  %v1008 = vpop.f32.mrf.mxu0
  %1009 = vdwg.mxu0
  %1011 = vrot.lane.b32.xlu0 %v917, 1
  %v1012 = vpop.permute.xlu0 %1011
  %1015 = vrot.lane.b32.xlu0 %v922, 2
  %v1016 = vpop.permute.xlu0 %1015
  %1019 = vrot.lane.b32.xlu0 %v927, 3
  %v1020 = vpop.permute.xlu0 %1019
  %1023 = vrot.lane.b32.xlu0 %v932, 4
  %v1024 = vpop.permute.xlu0 %1023
  %1027 = vrot.lane.b32.xlu0 %v937, 5
  %v1028 = vpop.permute.xlu0 %1027
  %1031 = vrot.lane.b32.xlu0 %v942, 6
  %v1032 = vpop.permute.xlu0 %1031
  %1035 = vrot.lane.b32.xlu0 %v947, 7
  %v1036 = vpop.permute.xlu0 %1035
  %vm1038 = vcmask 7168
  %v1039 = vsel %vm1038, %v912, %v1012
  %vm1040 = vcmask 15360
  %v1041 = vsel %vm1040, %v1039, %v1016
  %vm1042 = vcmask 23552
  %v1043 = vsel %vm1042, %v1041, %v1020
  %v1044 = vsel %vm780, %v1043, %v1024
  %vm1045 = vcmask 39936
  %v1046 = vsel %vm1045, %v1044, %v1028
  %vm1047 = vcmask 48128
  %v1048 = vsel %vm1047, %v1046, %v1032
  %vm1049 = vcmask 56320
  %v1050 = vsel %vm1049, %v1048, %v1036
  %1052 = vrot.lane.b32.xlu0 %v952, 3
  %v1053 = vpop.permute.xlu0 %1052
  %1056 = vrot.lane.b32.xlu0 %v957, 4
  %v1057 = vpop.permute.xlu0 %1056
  %v1059 = vsel %vm1042, %v1041, %v1053
  %v1060 = vsel %vm780, %v1059, %v1057
  %v1061 = vsel %vm1045, %v1060, %v1028
  %v1062 = vsel %vm1047, %v1061, %v1032
  %v1063 = vsel %vm1049, %v1062, %v1036
  %1065 = vrot.lane.b32.xlu0 %v967, 1
  %v1066 = vpop.permute.xlu0 %1065
  %1069 = vrot.lane.b32.xlu0 %v972, 2
  %v1070 = vpop.permute.xlu0 %1069
  %1073 = vrot.lane.b32.xlu0 %v977, 3
  %v1074 = vpop.permute.xlu0 %1073
  %1077 = vrot.lane.b32.xlu0 %v982, 4
  %v1078 = vpop.permute.xlu0 %1077
  %1081 = vrot.lane.b32.xlu0 %v987, 5
  %v1082 = vpop.permute.xlu0 %1081
  %1085 = vrot.lane.b32.xlu0 %v992, 6
  %v1086 = vpop.permute.xlu0 %1085
  %1089 = vrot.lane.b32.xlu0 %v997, 7
  %v1090 = vpop.permute.xlu0 %1089
  %v1092 = vsel %vm1038, %v962, %v1066
  %v1093 = vsel %vm1040, %v1092, %v1070
  %v1094 = vsel %vm1042, %v1093, %v1074
  %v1095 = vsel %vm780, %v1094, %v1078
  %v1096 = vsel %vm1045, %v1095, %v1082
  %v1097 = vsel %vm1047, %v1096, %v1086
  %v1098 = vsel %vm1049, %v1097, %v1090
  %1100 = vrot.lane.b32.xlu0 %v1002, 3
  %v1101 = vpop.permute.xlu0 %1100
  %1104 = vrot.lane.b32.xlu0 %v1007, 4
  %v1105 = vpop.permute.xlu0 %1104
  %v1107 = vsel %vm1042, %v1093, %v1101
  %v1108 = vsel %vm780, %v1107, %v1105
  %v1109 = vsel %vm1045, %v1108, %v1082
  %v1110 = vsel %vm1047, %v1109, %v1086
  %v1111 = vsel %vm1049, %v1110, %v1090
  %v1112 = vld [vmem:[#allocation2] sm:$0x1]
  %v1114 = vlaneseq
  %v1115 = vshrl.u32 %v1114, 7
  %v1116 = vsub.s32 0, %v1115
  %v1117 = vrot.slane %v1112, %v1116
  %1118 = vset.pattern.permute.xlu0 0
  %1119 = vperm.xlu0 %1118, %v1117
  %v1120 = vpop.permute.xlu0 %1119
  %v1122 = vadd.f32 %v1050, %v1120
  %v1123 = vadd.f32 %v1063, %v1120
  %v1124 = vadd.f32 %v1098, %v1120
  %v1125 = vadd.f32 %v1111, %v1120
  %v1126 = vxor.u32 %v1122, 2147483648
  %v1127 = vxor.u32 %v1123, 2147483648
  %v1128 = vxor.u32 %v1124, 2147483648
  %v1129 = vxor.u32 %v1125, 2147483648
  %v1130 = vmul.f32 %v1126, 1.442695
  %v1131 = vpow.pop %v1130
  %v1132 = vmul.f32 %v1127, 1.442695
  %v1133 = vpow.pop %v1132
  %v1134 = vmul.f32 %v1128, 1.442695
  %v1135 = vpow.pop %v1134
  %v1136 = vmul.f32 %v1129, 1.442695
  %v1137 = vpow.pop %v1136
  %v1138 = vadd.f32 %v1131, 1.0
  %v1139 = vadd.f32 %v1133, 1.0
  %v1140 = vadd.f32 %v1135, 1.0
  %v1141 = vadd.f32 %v1137, 1.0
  %v1142 = vrcp.pop %v1138
  %v1143 = vmul.f32 1.0, %v1142
  %v1144 = vrcp.pop %v1139
  %v1145 = vmul.f32 1.0, %v1144
  %v1146 = vrcp.pop %v1140
  %v1147 = vmul.f32 1.0, %v1146
  %v1148 = vrcp.pop %v1141
  %v1149 = vmul.f32 1.0, %v1148
  %v1150 = vld [vmem:[%s9] sm:$0xff]
  %v1151 = vld [vmem:[%s10] sm:$0x1]
  %v1153 = vlaneseq
  %v1154 = vshrl.u32 %v1153, 7
  %v1155 = vsub.s32 0, %v1154
  %v1156 = vrot.slane %v1151, %v1155
  %v1159 = vsel %vm88, %v1143, 0
  %v1162 = vsel %vm88, %v1145, 0
  %v1165 = vsel %vm88, %v1147, 0
  %v1168 = vsel %vm88, %v1149, 0
  %1170 = vmatprep.subr.mxu0 0.0
  %1171 = vmatpush1.msra.mxu0 0.0
  %1172 = vmatprep.subr.mxu0 0.0
  %1173 = vmatpush1.msra.mxu0 0.0
  %1174 = vmatprep.subr.mxu0 0.0
  %1175 = vmatpush1.msra.mxu0 0.0
  %1176 = vmatprep.subr.mxu0 0.0
  %1177 = vmatpush1.msra.mxu0 0.0
  %1178 = vmatprep.subr.mxu0 0.0
  %1179 = vmatpush1.msra.mxu0 0.0
  %1180 = vmatprep.subr.mxu0 0.0
  %1181 = vmatpush1.msra.mxu0 0.0
  %1182 = vmatprep.subr.mxu0 0.0
  %1183 = vmatpush1.msra.mxu0 0.0
  %1184 = vmatprep.subr.mxu0 0.0
  %1185 = vmatpush1.msra.mxu0 0.0
  %1186 = vmatprep.subr.mxu0 0.0
  %1187 = vmatpush1.msra.mxu0 0.0
  %1188 = vmatprep.subr.mxu0 0.0
  %1189 = vmatpush1.msra.mxu0 0.0
  %1190 = vmatprep.subr.mxu0 0.0
  %1191 = vmatpush1.msra.mxu0 0.0
  %1192 = vmatprep.subr.mxu0 0.0
  %1193 = vmatpush1.msra.mxu0 0.0
  %1194 = vmatprep.subr.mxu0 0.0
  %1195 = vmatpush1.msra.mxu0 0.0
  %1196 = vmatprep.subr.mxu0 0.0
  %1197 = vmatpush1.msra.mxu0 0.0
  %1198 = vmatprep.subr.mxu0 0.0
  %1199 = vmatpush1.msra.mxu0 0.0
  %1200 = vmatprep.subr.mxu0 0.0
  %1201 = vmatpush1.msra.mxu0 %v1150
  %1202 = vmatprep.subr.mxu0 0.0
  %1203 = vmatpush2.msra.mxu0 0.0
  %1204 = vmatprep.subr.mxu0 0.0
  %1205 = vmatpush2.msra.mxu0 0.0
  %1206 = vmatprep.subr.mxu0 0.0
  %1207 = vmatpush2.msra.mxu0 0.0
  %1208 = vmatprep.subr.mxu0 0.0
  %1209 = vmatpush2.msra.mxu0 0.0
  %1210 = vmatprep.subr.mxu0 0.0
  %1211 = vmatpush2.msra.mxu0 0.0
  %1212 = vmatprep.subr.mxu0 0.0
  %1213 = vmatpush2.msra.mxu0 0.0
  %1214 = vmatprep.subr.mxu0 0.0
  %1215 = vmatpush2.msra.mxu0 0.0
  %1216 = vmatprep.subr.mxu0 0.0
  %1217 = vmatpush2.msra.mxu0 0.0
  %1218 = vmatprep.subr.mxu0 0.0
  %1219 = vmatpush2.msra.mxu0 0.0
  %1220 = vmatprep.subr.mxu0 0.0
  %1221 = vmatpush2.msra.mxu0 0.0
  %1222 = vmatprep.subr.mxu0 0.0
  %1223 = vmatpush2.msra.mxu0 0.0
  %1224 = vmatprep.subr.mxu0 0.0
  %1225 = vmatpush2.msra.mxu0 0.0
  %1226 = vmatprep.subr.mxu0 0.0
  %1227 = vmatpush2.msra.mxu0 0.0
  %1228 = vmatprep.subr.mxu0 0.0
  %1229 = vmatpush2.msra.mxu0 0.0
  %1230 = vmatprep.subr.mxu0 0.0
  %1231 = vmatpush2.msra.mxu0 0.0
  %1232 = vmatprep.subr.mxu0 0.0
  %1233 = vmatpush2.msra.mxu0 0.0
  %1234 = vmatprep.mubr.f32.mxu0 0.0
  %1235 = vmatmul.mubr.f32.gmra.mxu0 %v1159
  %v1236 = vpop.f32.mrf.mxu0
  %v1237 = vadd.f32 %v1156, %v1236
  %v1238 = vpop.f32.mrf.mxu0
  %1239 = vmatprep.mubr.f32.mxu0 0.0
  %1240 = vmatmul.mubr.f32.gmra.mxu0 %v1162
  %v1241 = vpop.f32.mrf.mxu0
  %v1242 = vadd.f32 %v1156, %v1241
  %v1243 = vpop.f32.mrf.mxu0
  %1244 = vmatprep.mubr.f32.mxu0 0.0
  %1245 = vmatmul.mubr.f32.gmra.mxu0 %v1165
  %v1246 = vpop.f32.mrf.mxu0
  %v1247 = vadd.f32 %v1156, %v1246
  %v1248 = vpop.f32.mrf.mxu0
  %1249 = vmatprep.mubr.f32.mxu0 0.0
  %1250 = vmatmul.mubr.f32.gmra.mxu0 %v1168
  %v1251 = vpop.f32.mrf.mxu0
  %v1252 = vadd.f32 %v1156, %v1251
  %v1253 = vpop.f32.mrf.mxu0
  %1254 = vdwg.mxu0
  %v1255 = vmax.f32 %v1237, 0.0
  %v1256 = vmax.f32 %v1242, 0.0
  %v1257 = vmax.f32 %v1247, 0.0
  %v1258 = vmax.f32 %v1252, 0.0
  %v1259 = vld [vmem:[%s11] sm:$0xff]
  %v1260 = vld [vmem:[#allocation3] sm:$0x1]
  %v1262 = vlaneseq
  %v1263 = vshrl.u32 %v1262, 7
  %v1264 = vsub.s32 0, %v1263
  %v1265 = vrot.slane %v1260, %v1264
  %v1268 = vsel %vm88, %v1255, 0
  %v1271 = vsel %vm88, %v1256, 0
  %v1274 = vsel %vm88, %v1257, 0
  %v1277 = vsel %vm88, %v1258, 0
  %1279 = vmatprep.subr.mxu0 0.0
  %1280 = vmatpush1.msra.mxu0 0.0
  %1281 = vmatprep.subr.mxu0 0.0
  %1282 = vmatpush1.msra.mxu0 0.0
  %1283 = vmatprep.subr.mxu0 0.0
  %1284 = vmatpush1.msra.mxu0 0.0
  %1285 = vmatprep.subr.mxu0 0.0
  %1286 = vmatpush1.msra.mxu0 0.0
  %1287 = vmatprep.subr.mxu0 0.0
  %1288 = vmatpush1.msra.mxu0 0.0
  %1289 = vmatprep.subr.mxu0 0.0
  %1290 = vmatpush1.msra.mxu0 0.0
  %1291 = vmatprep.subr.mxu0 0.0
  %1292 = vmatpush1.msra.mxu0 0.0
  %1293 = vmatprep.subr.mxu0 0.0
  %1294 = vmatpush1.msra.mxu0 0.0
  %1295 = vmatprep.subr.mxu0 0.0
  %1296 = vmatpush1.msra.mxu0 0.0
  %1297 = vmatprep.subr.mxu0 0.0
  %1298 = vmatpush1.msra.mxu0 0.0
  %1299 = vmatprep.subr.mxu0 0.0
  %1300 = vmatpush1.msra.mxu0 0.0
  %1301 = vmatprep.subr.mxu0 0.0
  %1302 = vmatpush1.msra.mxu0 0.0
  %1303 = vmatprep.subr.mxu0 0.0
  %1304 = vmatpush1.msra.mxu0 0.0
  %1305 = vmatprep.subr.mxu0 0.0
  %1306 = vmatpush1.msra.mxu0 0.0
  %1307 = vmatprep.subr.mxu0 0.0
  %1308 = vmatpush1.msra.mxu0 0.0
  %1309 = vmatprep.subr.mxu0 0.0
  %1310 = vmatpush1.msra.mxu0 %v1259
  %1311 = vmatprep.subr.mxu0 0.0
  %1312 = vmatpush2.msra.mxu0 0.0
  %1313 = vmatprep.subr.mxu0 0.0
  %1314 = vmatpush2.msra.mxu0 0.0
  %1315 = vmatprep.subr.mxu0 0.0
  %1316 = vmatpush2.msra.mxu0 0.0
  %1317 = vmatprep.subr.mxu0 0.0
  %1318 = vmatpush2.msra.mxu0 0.0
  %1319 = vmatprep.subr.mxu0 0.0
  %1320 = vmatpush2.msra.mxu0 0.0
  %1321 = vmatprep.subr.mxu0 0.0
  %1322 = vmatpush2.msra.mxu0 0.0
  %1323 = vmatprep.subr.mxu0 0.0
  %1324 = vmatpush2.msra.mxu0 0.0
  %1325 = vmatprep.subr.mxu0 0.0
  %1326 = vmatpush2.msra.mxu0 0.0
  %1327 = vmatprep.subr.mxu0 0.0
  %1328 = vmatpush2.msra.mxu0 0.0
  %1329 = vmatprep.subr.mxu0 0.0
  %1330 = vmatpush2.msra.mxu0 0.0
  %1331 = vmatprep.subr.mxu0 0.0
  %1332 = vmatpush2.msra.mxu0 0.0
  %1333 = vmatprep.subr.mxu0 0.0
  %1334 = vmatpush2.msra.mxu0 0.0
  %1335 = vmatprep.subr.mxu0 0.0
  %1336 = vmatpush2.msra.mxu0 0.0
  %1337 = vmatprep.subr.mxu0 0.0
  %1338 = vmatpush2.msra.mxu0 0.0
  %1339 = vmatprep.subr.mxu0 0.0
  %1340 = vmatpush2.msra.mxu0 0.0
  %1341 = vmatprep.subr.mxu0 0.0
  %1342 = vmatpush2.msra.mxu0 0.0
  %1343 = vmatprep.mubr.f32.mxu0 0.0
  %1344 = vmatmul.mubr.f32.gmra.mxu0 %v1268
  %v1345 = vpop.f32.mrf.mxu0
  %v1346 = vadd.f32 %v1265, %v1345
  %v1347 = vpop.f32.mrf.mxu0
  %1348 = vmatprep.mubr.f32.mxu0 0.0
  %1349 = vmatmul.mubr.f32.gmra.mxu0 %v1271
  %v1350 = vpop.f32.mrf.mxu0
  %v1351 = vadd.f32 %v1265, %v1350
  %v1352 = vpop.f32.mrf.mxu0
  %1353 = vmatprep.mubr.f32.mxu0 0.0
  %1354 = vmatmul.mubr.f32.gmra.mxu0 %v1274
  %v1355 = vpop.f32.mrf.mxu0
  %v1356 = vadd.f32 %v1265, %v1355
  %v1357 = vpop.f32.mrf.mxu0
  %1358 = vmatprep.mubr.f32.mxu0 0.0
  %1359 = vmatmul.mubr.f32.gmra.mxu0 %v1277
  %v1360 = vpop.f32.mrf.mxu0
  %v1361 = vadd.f32 %v1265, %v1360
  %v1362 = vpop.f32.mrf.mxu0
  %1363 = vdwg.mxu0
  %v1364 = vxor.u32 %v1346, 2147483648
  %v1365 = vxor.u32 %v1351, 2147483648
  %v1366 = vxor.u32 %v1356, 2147483648
  %v1367 = vxor.u32 %v1361, 2147483648
  %v1368 = vmul.f32 %v1364, 1.442695
  %v1369 = vpow.pop %v1368
  %v1370 = vmul.f32 %v1365, 1.442695
  %v1371 = vpow.pop %v1370
  %v1372 = vmul.f32 %v1366, 1.442695
  %v1373 = vpow.pop %v1372
  %v1374 = vmul.f32 %v1367, 1.442695
  %v1375 = vpow.pop %v1374
  %v1376 = vadd.f32 %v1369, 1.0
  %v1377 = vadd.f32 %v1371, 1.0
  %v1378 = vadd.f32 %v1373, 1.0
  %v1379 = vadd.f32 %v1375, 1.0
  %v1380 = vrcp.pop %v1376
  %v1381 = vmul.f32 1.0, %v1380
  %v1382 = vrcp.pop %v1377
  %v1383 = vmul.f32 1.0, %v1382
  %v1384 = vrcp.pop %v1378
  %v1385 = vmul.f32 1.0, %v1384
  %v1386 = vrcp.pop %v1379
  %v1387 = vmul.f32 1.0, %v1386
  %v1388 = vmul.f32 %v1381, %v1385
  %v1389 = vmul.f32 %v1383, %v1387
  %v1390 = vrsqrt.pop %v1388
  %v1391 = vmul.f32 %v1388, %v1390
  %vm1392 = vcmp.eq.f32.partialorder %v1388, inf
  %v1393 = vsel %vm1392, %v1388, %v1391
  %vm1394 = vcmp.eq.f32.partialorder %v1388, 0.0
  %v1395 = vand.u32 %v1388, 2147483648
  %v1396 = vsel %vm1394, %v1395, %v1393
  %v1397 = vrsqrt.pop %v1389
  %v1398 = vmul.f32 %v1389, %v1397
  %vm1399 = vcmp.eq.f32.partialorder %v1389, inf
  %v1400 = vsel %vm1399, %v1389, %v1398
  %vm1401 = vcmp.eq.f32.partialorder %v1389, 0.0
  %v1402 = vand.u32 %v1389, 2147483648
  %v1403 = vsel %vm1401, %v1402, %v1400
  %v1404 = vmax.f32 %v1396, %v1403
  %1405 = vst.msk [vmem:[%s13] sm:$0xff] %vm1038, %v1404
  // Predicated region
  $region54: #{tpu_custom_call.1} parent=0 // pred_check
    _
  $region55: #{tpu_custom_call.1} parent=0 // pred_check_branch
    %1407 = sbr.rel (0) target = $region57
  $region56: #{tpu_custom_call.1} parent=0 // pred_region
    _
  $region57: #{tpu_custom_call.1} parent=0 // pred_fallthru
    _
  // Predicated region
  $region58: #{tpu_custom_call.1} parent=0 // pred_check
    _
  $region59: #{tpu_custom_call.1} parent=0 // pred_check_branch
    %1409 = sbr.rel (0) target = $region61
  $region60: #{tpu_custom_call.1} parent=0 // pred_region
    _
  $region61: #{tpu_custom_call.1} parent=0 // pred_fallthru
    _

</llo_original>
